<compile_context>
chip_gen: v7x
topology: tpu7x:2x2x1
jax: 0.10.0
libtpu: 0.0.40
codegen_flags: <defaults>
</compile_context>

<pallas_src>
import functools

import jax
import jax.numpy as jnp
from jax.experimental import pallas as pl
from jax.experimental.pallas import tpu as pltpu

BN_EPS = 1e-5


def _round_up(x, m):
    return (x + m - 1) // m * m


def _pick_tile(dim, prefs):
    """Largest preferred tile (prefs in DESCENDING order) that divides `dim`."""
    for p in prefs:
        if dim % p == 0:
            return p
    return dim  # callers pad dims to a pref multiple, so this is only a safety net


def _tpu_vmem_bytes():
    """Per-core VMEM capacity; conservative (v7x, 64 MiB) default if query fails."""
    try:
        cap = getattr(pltpu.get_tpu_info(), "vmem_capacity_bytes", None)
        if cap:
            return int(cap)
    except Exception:
        pass
    return 64 * 1024 * 1024


# ---------------------- fused conv + BN + ReLU (primary) ----------------------

def _fused_conv_bn_relu_kernel(a_ref, b_ref, gamma_ref, beta_ref, o_ref, acc_ref,
                               *, inv_m, m_valid):
    """Whole (M_pad, tn) output strip resident in VMEM.

    grid = (nj, nk): j over Cout tiles ("parallel"), k over the contraction
    ("arbitrary").  acc_ref is the f32 strip accumulator; statistics + BN + ReLU
    run once per strip at k == nk-1, so the conv intermediate never hits HBM.
    """
    k = pl.program_id(1)
    nk = pl.num_programs(1)

    @pl.when(k == 0)
    def _():
        acc_ref[...] = jnp.zeros_like(acc_ref)

    acc_ref[...] += jnp.dot(a_ref[...], b_ref[...],
                            preferred_element_type=jnp.float32)

    @pl.when(k == nk - 1)
    def _():
        y = acc_ref[...]                                   # (M_pad, tn) f32
        mp = y.shape[0]
        # Padded rows of A are zero -> y rows are zero -> exact column sums.
        mean = jnp.sum(y, axis=0, keepdims=True) * inv_m
        centered = y - mean
        if m_valid < mp:  # static: keep padded rows out of the variance
            rows = jax.lax.broadcasted_iota(jnp.int32, (mp, 1), 0)
            cvalid = jnp.where(rows < m_valid, centered, 0.0)
        else:
            cvalid = centered
        # Centered second moment: no E[y^2] - E[y]^2 cancellation (review concern).
        var = jnp.sum(cvalid * cvalid, axis=0, keepdims=True) * inv_m
        scale = gamma_ref[...] * jax.lax.rsqrt(var + BN_EPS)
        o_ref[...] = jnp.maximum(centered * scale + beta_ref[...],
                                 0.0).astype(o_ref.dtype)


def _fused_conv_bn_relu(a, b, gamma2, beta2, *, m_valid, tn, tk, out_dtype,
                        vmem_limit):
    """a:(M_pad,K_pad)bf16 @ b:(K_pad,N_pad)bf16 -> BN(batch stats) -> ReLU."""
    M_pad, K_pad = a.shape
    _, N_pad = b.shape
    kernel = functools.partial(_fused_conv_bn_relu_kernel,
                               inv_m=1.0 / float(m_valid), m_valid=m_valid)
    return pl.pallas_call(
        kernel,
        out_shape=jax.ShapeDtypeStruct((M_pad, N_pad), out_dtype),
        grid=(N_pad // tn, K_pad // tk),
        in_specs=[
            # A strip is re-read per j tile; acceptable since nj is tiny whenever
            # the fused regime (strip fits VMEM) applies.
            pl.BlockSpec((M_pad, tk), lambda j, k: (0, k)),
            pl.BlockSpec((tk, tn), lambda j, k: (k, j)),
            pl.BlockSpec((1, tn), lambda j, k: (0, j)),
            pl.BlockSpec((1, tn), lambda j, k: (0, j)),
        ],
        out_specs=pl.BlockSpec((M_pad, tn), lambda j, k: (0, j)),
        scratch_shapes=[pltpu.VMEM((M_pad, tn), jnp.float32)],
        compiler_params=pltpu.CompilerParams(
            dimension_semantics=("parallel", "arbitrary"),
            vmem_limit_bytes=vmem_limit,
        ),
    )(a, b, gamma2, beta2)


# -------------------- two-pass fallback (large feature maps) ------------------

def _matmul_partial_stats_kernel(a_ref, b_ref, y_ref, psum_ref, pssq_ref,
                                 acc_ref, *, tk):
    """(tm, tn) tile of A @ B with per-M-tile partial column sum / sum-of-squares.

    grid = (nj, ni, nk): j and i are "parallel" (stats are per-i partials, no
    cross-i accumulation -> megacore-shardable on v7x), k is the contraction.
    b_ref is the full (K_pad, tn) weight strip (index_map (0, j)): DMA'd once per
    j instead of ni times; the tk chunk is sliced in-kernel with pl.ds.
    """
    k = pl.program_id(2)
    nk = pl.num_programs(2)

    @pl.when(k == 0)
    def _():
        acc_ref[...] = jnp.zeros_like(acc_ref)

    koff = pl.multiple_of(k * tk, tk)
    acc_ref[...] += jnp.dot(a_ref[...], b_ref[pl.ds(koff, tk), :],
                            preferred_element_type=jnp.float32)

    @pl.when(k == nk - 1)
    def _():
        y = acc_ref[...]
        ones = jnp.ones((1, y.shape[0]), jnp.float32)
        y_ref[...] = y.astype(y_ref.dtype)
        # Column sums on the MXU (idle slot in the epilogue); only y*y on the VPU.
        psum_ref[...] = jnp.dot(ones, y, preferred_element_type=jnp.float32)
        pssq_ref[...] = jnp.dot(ones, y * y, preferred_element_type=jnp.float32)


def _matmul_partial_stats(a, b, *, tm, tn, tk, vmem_limit):
    M_pad, K_pad = a.shape
    _, N_pad = b.shape
    ni = M_pad // tm
    kernel = functools.partial(_matmul_partial_stats_kernel, tk=tk)
    return pl.pallas_call(
        kernel,
        out_shape=(jax.ShapeDtypeStruct((M_pad, N_pad), jnp.bfloat16),
                   jax.ShapeDtypeStruct((ni, N_pad), jnp.float32),
                   jax.ShapeDtypeStruct((ni, N_pad), jnp.float32)),
        grid=(N_pad // tn, ni, K_pad // tk),
        in_specs=[
            pl.BlockSpec((tm, tk), lambda j, i, k: (i, k)),
            pl.BlockSpec((K_pad, tn), lambda j, i, k: (0, j)),  # weights resident
        ],
        out_specs=(
            pl.BlockSpec((tm, tn), lambda j, i, k: (i, j)),
            pl.BlockSpec((1, tn), lambda j, i, k: (i, j)),
            pl.BlockSpec((1, tn), lambda j, i, k: (i, j)),
        ),
        scratch_shapes=[pltpu.VMEM((tm, tn), jnp.float32)],
        compiler_params=pltpu.CompilerParams(
            dimension_semantics=("parallel", "parallel", "arbitrary"),
            vmem_limit_bytes=vmem_limit,
        ),
    )(a, b)


def _bn_relu_kernel(y_ref, sum_ref, ssq_ref, gamma_ref, beta_ref, o_ref, *, inv_m):
    y = y_ref[...].astype(jnp.float32)
    mean = sum_ref[...] * inv_m
    # NOTE: E[y^2]-E[y]^2 over fully reduced f32 sums (fallback path only); the
    # fused path uses the cancellation-free centered formulation.
    var = ssq_ref[...] * inv_m - mean * mean
    scale = gamma_ref[...] * jax.lax.rsqrt(var + BN_EPS)
    shift = beta_ref[...] - mean * scale
    o_ref[...] = jnp.maximum(y * scale + shift, 0.0).astype(o_ref.dtype)


def _bn_relu(y, col_sum, col_ssq, gamma2, beta2, *, m_rows, tm, tn, out_dtype,
             vmem_limit):
    M_pad, N_pad = y.shape
    kernel = functools.partial(_bn_relu_kernel, inv_m=1.0 / float(m_rows))
    return pl.pallas_call(
        kernel,
        out_shape=jax.ShapeDtypeStruct((M_pad, N_pad), out_dtype),
        grid=(M_pad // tm, N_pad // tn),
        in_specs=[
            pl.BlockSpec((tm, tn), lambda i, j: (i, j)),
            pl.BlockSpec((1, tn), lambda i, j: (0, j)),
            pl.BlockSpec((1, tn), lambda i, j: (0, j)),
            pl.BlockSpec((1, tn), lambda i, j: (0, j)),
            pl.BlockSpec((1, tn), lambda i, j: (0, j)),
        ],
        out_specs=pl.BlockSpec((tm, tn), lambda i, j: (i, j)),
        compiler_params=pltpu.CompilerParams(
            dimension_semantics=("parallel", "parallel"),
            vmem_limit_bytes=vmem_limit,
        ),
    )(y, col_sum, col_ssq, gamma2, beta2)


# ------------------------------ glue / forward ------------------------------

def _im2col(x, kh, kw, stride, pad):
    """x: (N,H,W,C) -> (N*Ho*Wo, kh*kw*C); column index = (i*kw + j)*C + c."""
    N, H, W, C = x.shape
    if pad > 0:
        x = jnp.pad(x, ((0, 0), (pad, pad), (pad, pad), (0, 0)))
    Hp, Wp = H + 2 * pad, W + 2 * pad
    Ho = (Hp - kh) // stride + 1
    Wo = (Wp - kw) // stride + 1
    cols = []
    for i in range(kh):
        for j in range(kw):
            cols.append(x[:, i:i + stride * Ho:stride, j:j + stride * Wo:stride, :])
    cols = jnp.stack(cols, axis=3)                      # (N, Ho, Wo, kh*kw, C)
    return cols.reshape(N * Ho * Wo, kh * kw * C), Ho, Wo


def conv_block_forward(x_nchw, w, gamma, beta, stride=1, padding=None,
                       out_dtype=jnp.float32):
    """ConvBlock: Conv2d(bias=False) -> BatchNorm2d (batch stats, as in PyTorch
    training-mode forward) -> ReLU.  NCHW in / NCHW out.

    out_dtype defaults to float32 to match the PyTorch module; pass bfloat16 for
    chained blocks to halve the output store traffic (per review, esp. v5e).
    """
    Cout, Cin, kh, kw = w.shape
    pad = (kh // 2) if padding is None else padding

    # bf16 before the layout glue: transpose / pad / im2col move half the bytes.
    x = jnp.transpose(x_nchw.astype(jnp.bfloat16), (0, 2, 3, 1))     # NCHW -> NHWC
    Nb = x.shape[0]

    # TODO(synk): stream the kh*kw taps through the K grid axis with shifted-window
    # BlockSpecs reading NHWC x directly (removes the kh*kw x im2col HBM blowup),
    # and/or use CompilerParams(allow_input_fusion=...) to pull the im2col slicing
    # into the pallas_call input DMA.
    cols, Ho, Wo = _im2col(x, kh, kw, stride, pad)                    # (M, K) bf16
    wm = jnp.transpose(w, (2, 3, 1, 0)).reshape(kh * kw * Cin, Cout)
    wm = wm.astype(jnp.bfloat16)

    M, K = cols.shape
    # Zero-pad to MXU/lane-friendly sizes: K and Cout to multiples of 128 so the
    # contraction is full-depth and all loads/stores are unmasked & lane-dense.
    K_pad = _round_up(K, 128)
    N_pad = _round_up(Cout, 128)

    vmem_cap = _tpu_vmem_bytes()
    # ~96 MiB on v5e/v6e (128 MiB physical VMEM), ~48 MiB on v7x (64 MiB).
    vmem_limit = min(int(vmem_cap * 3 // 4), 100 * 1024 * 1024)
    big_vmem = vmem_cap >= 100 * 1024 * 1024
    tk_prefs = (1024, 512, 256, 128) if big_vmem else (512, 256, 128)
    tm_prefs = ((1024, 512, 256, 128, 64, 32, 16) if big_vmem
                else (512, 256, 128, 64, 32, 16))

    tn = _pick_tile(N_pad, (256, 128))
    tk = _pick_tile(K_pad, tk_prefs)
    out_bytes = jnp.dtype(out_dtype).itemsize

    gamma2 = jnp.pad(gamma.astype(jnp.float32), (0, N_pad - Cout)).reshape(1, N_pad)
    beta2 = jnp.pad(beta.astype(jnp.float32), (0, N_pad - Cout)).reshape(1, N_pad)
    wm = jnp.pad(wm, ((0, K_pad - K), (0, N_pad - Cout)))

    # Fused single-pass path whenever a whole (M, tn) column strip fits in VMEM.
    M_f = _round_up(M, 16)                          # bf16 packs 16 sublanes

    def fused_need(tk_):
        return (M_f * tn * 4                        # f32 accumulator strip
                + 2 * M_f * tn * out_bytes          # double-buffered output block
                + 2 * M_f * tk_ * 2                 # double-buffered A block
                + 2 * tk_ * tn * 2                  # double-buffered B block
                + 4 * tn * 4)                       # gamma / beta

    budget = vmem_cap // 2
    tk_fused = tk if fused_need(tk) <= budget else 128
    if fused_need(tk_fused) <= budget:
        cols_p = jnp.pad(cols, ((0, M_f - M), (0, K_pad - K)))
        out = _fused_conv_bn_relu(cols_p, wm, gamma2, beta2, m_valid=M, tn=tn,
                                  tk=tk_fused, out_dtype=out_dtype,
                                  vmem_limit=vmem_limit)
    else:
        # Two-pass fallback: tiled matmul with per-M-tile partial stats (M axis
        # "parallel" -> both v7x TensorCores busy even when Cout//tn == 1), a tiny
        # XLA reduce of the partials, then a lane-dense BN + ReLU pass.
        tm = next((p for p in tm_prefs if p <= M), 16)
        M_p = _round_up(M, tm)                      # pad M to the tile multiple
        cols_p = jnp.pad(cols, ((0, M_p - M), (0, K_pad - K)))
        y, psum, pssq = _matmul_partial_stats(cols_p, wm, tm=tm, tn=tn, tk=tk,
                                              vmem_limit=vmem_limit)
        col_sum = jnp.sum(psum, axis=0, keepdims=True)
        col_ssq = jnp.sum(pssq, axis=0, keepdims=True)
        tm_bn = _pick_tile(M_p, tm_prefs)
        out = _bn_relu(y, col_sum, col_ssq, gamma2, beta2, m_rows=M, tm=tm_bn,
                       tn=tn, out_dtype=out_dtype, vmem_limit=vmem_limit)

    out = out[:M, :Cout].reshape(Nb, Ho, Wo, Cout)
    return jnp.transpose(out, (0, 3, 1, 2))                           # NHWC -> NCHW


def _reference(x_nchw, w, gamma, beta, stride, pad):
    """Pure-JAX f32 reference (same math) for a loose correctness check."""
    x = jnp.transpose(x_nchw, (0, 2, 3, 1)).astype(jnp.float32)
    Cout, Cin, kh, kw = w.shape
    cols, Ho, Wo = _im2col(x, kh, kw, stride, pad)
    wm = jnp.transpose(w, (2, 3, 1, 0)).reshape(kh * kw * Cin, Cout)
    y = cols @ wm
    mean = jnp.mean(y, axis=0)
    var = jnp.var(y, axis=0)
    out = (y - mean) * gamma * jax.lax.rsqrt(var + BN_EPS) + beta
    out = jnp.maximum(out, 0.0).reshape(x.shape[0], Ho, Wo, Cout)
    return jnp.transpose(out, (0, 3, 1, 2))


# ----------------------------------- main -----------------------------------

if __name__ == "__main__":
    key = jax.random.PRNGKey(0)
    kw_key, kg_key, kb_key, kx_key = jax.random.split(key, 4)

    batch, in_features, H, W = 2, 4, 16, 16
    out_features, kernel_size, stride = 128, 3, 1          # padding = kernel_size // 2

    w = 0.05 * jax.random.normal(
        kw_key, (out_features, in_features, kernel_size, kernel_size), jnp.float32)
    gamma = 1.0 + 0.1 * jax.random.normal(kg_key, (out_features,), jnp.float32)
    beta = 0.1 * jax.random.normal(kb_key, (out_features,), jnp.float32)
    x = jax.random.normal(kx_key, (batch, in_features, H, W), jnp.float32)

    out = conv_block_forward(x, w, gamma, beta, stride=stride, padding=None)
    out = jax.block_until_ready(out)

    assert out.shape == (batch, out_features, H, W), out.shape
    assert bool(jnp.all(jnp.isfinite(out)))

    ref = _reference(x, w, gamma, beta, stride, kernel_size // 2)
    max_err = float(jnp.max(jnp.abs(out - ref)))
    assert max_err < 1e-1, f"max abs error vs f32 reference: {max_err}"

    print("KERNEL_OK")
</pallas_src>

<mosaic_0001>
module attributes {stable_mosaic.version = 11 : i64} {
  func.func @_fused_conv_bn_relu_kernel(%arg0: i32, %arg1: i32, %arg2: memref<512x128xbf16, #tpu.memory_space<vmem>>, %arg3: memref<128x128xbf16, #tpu.memory_space<vmem>>, %arg4: memref<1x128xf32, #tpu.memory_space<vmem>>, %arg5: memref<1x128xf32, #tpu.memory_space<vmem>>, %arg6: memref<512x128xf32, #tpu.memory_space<vmem>>, %arg7: memref<512x128xf32, #tpu.memory_space<vmem>>) attributes {dimension_semantics = [#tpu.dimension_semantics<parallel>, #tpu.dimension_semantics<arbitrary>], iteration_bounds = array<i64: 1, 1>, scalar_prefetch = 0 : i64, scratch_operands = 1 : i64, tpu.core_type = #tpu.core_type<tc>, window_params = [{transform_indices = @transform_0, window_bounds = array<i64: 512, 128>}, {transform_indices = @transform_1, window_bounds = array<i64: 128, 128>}, {transform_indices = @transform_2, window_bounds = array<i64: 1, 128>}, {transform_indices = @transform_3, window_bounds = array<i64: 1, 128>}, {transform_indices = @transform_4, window_bounds = array<i64: 512, 128>}]} {
    %c0_i32 = arith.constant 0 : i32
    %0 = arith.cmpi eq, %arg1, %c0_i32 : i32
    %1 = arith.extui %0 : i1 to i32
    %c0_i32_0 = arith.constant 0 : i32
    %2 = arith.cmpi ne, %1, %c0_i32_0 : i32
    scf.if %2 {
      %cst_10 = arith.constant 0.000000e+00 : f32
      %12 = vector.broadcast %cst_10 : f32 to vector<512x128xf32>
      %c0_11 = arith.constant 0 : index
      %c0_12 = arith.constant 0 : index
      %13 = vector.load %arg7[%c0_11, %c0_12] : memref<512x128xf32, #tpu.memory_space<vmem>>, vector<512x128xf32>
      tpu.vector_store %arg7[%c0_11, %c0_12], %12 {strides = array<i32>} : memref<512x128xf32, #tpu.memory_space<vmem>>, vector<512x128xf32>,
    } else {
    }
    %c0 = arith.constant 0 : index
    %c0_1 = arith.constant 0 : index
    %3 = vector.load %arg7[%c0, %c0_1] : memref<512x128xf32, #tpu.memory_space<vmem>>, vector<512x128xf32>
    %c0_2 = arith.constant 0 : index
    %c0_3 = arith.constant 0 : index
    %4 = vector.load %arg2[%c0_2, %c0_3] : memref<512x128xbf16, #tpu.memory_space<vmem>>, vector<512x128xbf16>
    %c0_4 = arith.constant 0 : index
    %c0_5 = arith.constant 0 : index
    %5 = vector.load %arg3[%c0_4, %c0_5] : memref<128x128xbf16, #tpu.memory_space<vmem>>, vector<128x128xbf16>
    %cst = arith.constant dense<0.000000e+00> : vector<512x128xf32>
    %6 = tpu.matmul %4, %5, %cst {dimension_numbers = #tpu.dot_dimension_numbers<[1], [0], [0], [1], [0, 0, 1, 1], [], []>} : vector<512x128xbf16>, vector<128x128xbf16>, vector<512x128xf32> -> vector<512x128xf32>
    %7 = arith.addf %3, %6 : vector<512x128xf32>
    %c0_6 = arith.constant 0 : index
    %c0_7 = arith.constant 0 : index
    %8 = vector.load %arg7[%c0_6, %c0_7] : memref<512x128xf32, #tpu.memory_space<vmem>>, vector<512x128xf32>
    tpu.vector_store %arg7[%c0_6, %c0_7], %7 {strides = array<i32>} : memref<512x128xf32, #tpu.memory_space<vmem>>, vector<512x128xf32>,
    %c0_i32_8 = arith.constant 0 : i32
    %9 = arith.cmpi eq, %arg1, %c0_i32_8 : i32
    %10 = arith.extui %9 : i1 to i32
    %c0_i32_9 = arith.constant 0 : i32
    %11 = arith.cmpi ne, %10, %c0_i32_9 : i32
    scf.if %11 {
      %c0_10 = arith.constant 0 : index
      %c0_11 = arith.constant 0 : index
      %12 = vector.load %arg7[%c0_10, %c0_11] : memref<512x128xf32, #tpu.memory_space<vmem>>, vector<512x128xf32>
      %cst_12 = arith.constant dense<0.000000e+00> : vector<128xf32>
      %13 = vector.multi_reduction <add>, %12, %cst_12 [0] : vector<512x128xf32> to vector<128xf32>
      %14 = vector.shape_cast %13 : vector<128xf32> to vector<1x128xf32>
      %cst_13 = arith.constant 0.001953125 : f32
      %15 = vector.broadcast %cst_13 : f32 to vector<1x128xf32>
      %16 = arith.mulf %14, %15 : vector<1x128xf32>
      %17 = vector.broadcast %16 : vector<1x128xf32> to vector<512x128xf32>
      %18 = arith.subf %12, %17 : vector<512x128xf32>
      %19 = arith.mulf %18, %18 : vector<512x128xf32>
      %cst_14 = arith.constant dense<0.000000e+00> : vector<128xf32>
      %20 = vector.multi_reduction <add>, %19, %cst_14 [0] : vector<512x128xf32> to vector<128xf32>
      %21 = vector.shape_cast %20 : vector<128xf32> to vector<1x128xf32>
      %cst_15 = arith.constant 0.001953125 : f32
      %22 = vector.broadcast %cst_15 : f32 to vector<1x128xf32>
      %23 = arith.mulf %21, %22 : vector<1x128xf32>
      %c0_16 = arith.constant 0 : index
      %c0_17 = arith.constant 0 : index
      %24 = vector.load %arg4[%c0_16, %c0_17] : memref<1x128xf32, #tpu.memory_space<vmem>>, vector<1x128xf32>
      %cst_18 = arith.constant 9.99999974E-6 : f32
      %25 = vector.broadcast %cst_18 : f32 to vector<1x128xf32>
      %26 = arith.addf %23, %25 : vector<1x128xf32>
      %27 = math.rsqrt %26 : vector<1x128xf32>
      %28 = arith.mulf %24, %27 : vector<1x128xf32>
      %29 = vector.broadcast %28 : vector<1x128xf32> to vector<512x128xf32>
      %30 = arith.mulf %18, %29 : vector<512x128xf32>
      %c0_19 = arith.constant 0 : index
      %c0_20 = arith.constant 0 : index
      %31 = vector.load %arg5[%c0_19, %c0_20] : memref<1x128xf32, #tpu.memory_space<vmem>>, vector<1x128xf32>
      %32 = vector.broadcast %31 : vector<1x128xf32> to vector<512x128xf32>
      %33 = arith.addf %30, %32 : vector<512x128xf32>
      %cst_21 = arith.constant 0.000000e+00 : f32
      %34 = vector.broadcast %cst_21 : f32 to vector<512x128xf32>
      %35 = arith.maximumf %33, %34 : vector<512x128xf32>
      %c0_22 = arith.constant 0 : index
      %c0_23 = arith.constant 0 : index
      %36 = vector.load %arg6[%c0_22, %c0_23] : memref<512x128xf32, #tpu.memory_space<vmem>>, vector<512x128xf32>
      tpu.vector_store %arg6[%c0_22, %c0_23], %35 {strides = array<i32>} : memref<512x128xf32, #tpu.memory_space<vmem>>, vector<512x128xf32>,
    } else {
    }
    return
  }
  func.func @transform_0(%arg0: i32, %arg1: i32) -> (i32, i32) {
    %c0_i32 = arith.constant 0 : i32
    %c0_i32_0 = arith.constant 0 : i32
    return %c0_i32, %arg1 : i32, i32
  }
  func.func @transform_1(%arg0: i32, %arg1: i32) -> (i32, i32) {
    %c0_i32 = arith.constant 0 : i32
    return %arg1, %arg0 : i32, i32
  }
  func.func @transform_2(%arg0: i32, %arg1: i32) -> (i32, i32) {
    %c0_i32 = arith.constant 0 : i32
    %c0_i32_0 = arith.constant 0 : i32
    return %c0_i32, %arg0 : i32, i32
  }
  func.func @transform_3(%arg0: i32, %arg1: i32) -> (i32, i32) {
    %c0_i32 = arith.constant 0 : i32
    %c0_i32_0 = arith.constant 0 : i32
    return %c0_i32, %arg0 : i32, i32
  }
  func.func @transform_4(%arg0: i32, %arg1: i32) -> (i32, i32) {
    %c0_i32 = arith.constant 0 : i32
    %c0_i32_0 = arith.constant 0 : i32
    return %c0_i32, %arg0 : i32, i32
  }
}

</mosaic_0001>

<llo_original>
// kernel: tpu_custom_call.1
$region0: #{tpu_custom_call.1}
  #allocation0 [shape = 'u32[]', space=smem, size = 0x4, offset = 0x4, fixed_abs, tag = 'smem constant byte address 0x4 - core index']
  #allocation1 [shape = 'u32[144,128]{1,0:T(1,128)}', space=vmem, size = 0x12000, scoped, tag = 'internal scratch']
  #allocation2 [shape = 'f32[512,128]{1,0:T(8,128)}', space=vmem, size = 0x40000, scoped, tag = 'scratch operand']
  %s0 = inlined_call_operand.hbm [shape: bf16[512,128], index: 0, kind: input, shape index: {}]
  %s1 = inlined_call_operand.hbm [shape: bf16[128,128], index: 1, kind: input, shape index: {}]
  %s2 = inlined_call_operand.vmem [shape: f32[1,128], index: 2, kind: input, shape index: {}]
  %s3 = inlined_call_operand.vmem [shape: f32[1,128], index: 3, kind: input, shape index: {}]
  %s4 = inlined_call_operand.hbm [shape: f32[512,128], index: 4, kind: output, shape index: {}]
  %s5 = sld [smem:[#allocation0]]
  $region42: #{tpu_custom_call.1} parent=0
    _
  %s7 = ssub.s32 1, %s5
  %s8 = scalar_select 0, %s7, %s5
  $region1: #{tpu_custom_call.1} parent=0
    #allocation3 [shape = 'u8[131072]{0}', space=vmem, size = 0x20000, scoped, tag = 'input window, operand 0, single buffered']
    #allocation4 [shape = 's32[1]{0}', space=sflag, size = 0x4, scoped, tag = 'scoped memory for tpu_custom_call.1']
    #allocation5 [shape = 's32[1]{0}', space=sflag, size = 0x4, scoped, tag = 'scoped memory for tpu_custom_call.1']
    #allocation6 [shape = 'u8[32768]{0}', space=vmem, size = 0x8000, scoped, tag = 'input window, operand 1, single buffered']
    #allocation7 [shape = 's32[1]{0}', space=sflag, size = 0x4, scoped, tag = 'scoped memory for tpu_custom_call.1']
    #allocation8 [shape = 'u8[262144]{0}', space=vmem, size = 0x40000, scoped, tag = 'output window, operand 0, single buffered']
    %9 = vsyncpa [#allocation4], 0
    %10 = vsyncpa [#allocation7], 0
    %11 = vsyncpa [#allocation5], 0
    // Predicated region
    $region2: #{tpu_custom_call.1} parent=1 // pred_check
      _
    $region3: #{tpu_custom_call.1} parent=1 // pred_check_branch
      %13 = sbr.rel (0) target = $region5
    $region4: #{tpu_custom_call.1} parent=1 // pred_region
      %s15 = ssub.s32 4096, 4096
      %16 = vsyncadd [#allocation4], %s15
      %s17 = sshll.u32 [#allocation3], 4
      %s18 = int_to_ptr.vmem [resolvable:$true] %s17
      %23 = dma.hbm_to_vmem [thread:$0]  %s0, 4096, %s18, [#allocation4], 64, 64, 4
    $region5: #{tpu_custom_call.1} parent=1 // pred_fallthru
      _
    // Predicated region
    $region6: #{tpu_custom_call.1} parent=1 // pred_check
      _
    $region7: #{tpu_custom_call.1} parent=1 // pred_check_branch
      %25 = sbr.rel (0) target = $region9
    $region8: #{tpu_custom_call.1} parent=1 // pred_region
      %s27 = ssub.s32 1024, 1024
      %28 = vsyncadd [#allocation7], %s27
      %s29 = sshll.u32 [#allocation6], 4
      %s30 = int_to_ptr.vmem [resolvable:$true] %s29
      %35 = dma.hbm_to_vmem [thread:$0]  %s1, 1024, %s30, [#allocation7], 64, 64, 4
    $region9: #{tpu_custom_call.1} parent=1 // pred_fallthru
      _
    // Predicated region
    $region10: #{tpu_custom_call.1} parent=1 // pred_check
      _
    $region11: #{tpu_custom_call.1} parent=1 // pred_check_branch
      %37 = sbr.rel (0) target = $region13
    $region12: #{tpu_custom_call.1} parent=1 // pred_region
      _
    $region13: #{tpu_custom_call.1} parent=1 // pred_fallthru
      _
    // Predicated region
    $region14: #{tpu_custom_call.1} parent=1 // pred_check
      _
    $region15: #{tpu_custom_call.1} parent=1 // pred_check_branch
      %39 = sbr.rel (0) target = $region17
    $region16: #{tpu_custom_call.1} parent=1 // pred_region
      _
    $region17: #{tpu_custom_call.1} parent=1 // pred_fallthru
      _
    // Predicated region
    $region18: #{tpu_custom_call.1} parent=1 // pred_check
      _
    $region19: #{tpu_custom_call.1} parent=1 // pred_check_branch
      %41 = sbr.rel (0) target = $region21
    $region20: #{tpu_custom_call.1} parent=1 // pred_region
      %42 = dma.done [#allocation4], 4096
    $region21: #{tpu_custom_call.1} parent=1 // pred_fallthru
      _
    // Predicated region
    $region22: #{tpu_custom_call.1} parent=1 // pred_check
      _
    $region23: #{tpu_custom_call.1} parent=1 // pred_check_branch
      %44 = sbr.rel (0) target = $region25
    $region24: #{tpu_custom_call.1} parent=1 // pred_region
      %45 = dma.done [#allocation7], 1024
    $region25: #{tpu_custom_call.1} parent=1 // pred_fallthru
      _
    %p47 = scmp.eq.s32.totalorder 0, 0
    // Predicated region
    $region26: #{tpu_custom_call.1} parent=1 // pred_check
      %p48 = pneg %p47
    $region27: #{tpu_custom_call.1} parent=1 // pred_check_branch
      %50 = sbr.rel (%p48) target = $region29
    $region28: #{tpu_custom_call.1} parent=1 // pred_region
      %51 = vst [vmem:[#allocation2] sm:$0xff] 0.0
      %52 = vst [vmem:[#allocation2 + $0x8] sm:$0xff] 0.0
      %53 = vst [vmem:[#allocation2 + $0x10] sm:$0xff] 0.0
      %54 = vst [vmem:[#allocation2 + $0x18] sm:$0xff] 0.0
      %55 = vst [vmem:[#allocation2 + $0x20] sm:$0xff] 0.0
      %56 = vst [vmem:[#allocation2 + $0x28] sm:$0xff] 0.0
      %57 = vst [vmem:[#allocation2 + $0x30] sm:$0xff] 0.0
      %58 = vst [vmem:[#allocation2 + $0x38] sm:$0xff] 0.0
      %59 = vst [vmem:[#allocation2 + $0x40] sm:$0xff] 0.0
      %60 = vst [vmem:[#allocation2 + $0x48] sm:$0xff] 0.0
      %61 = vst [vmem:[#allocation2 + $0x50] sm:$0xff] 0.0
      %62 = vst [vmem:[#allocation2 + $0x58] sm:$0xff] 0.0
      %63 = vst [vmem:[#allocation2 + $0x60] sm:$0xff] 0.0
      %64 = vst [vmem:[#allocation2 + $0x68] sm:$0xff] 0.0
      %65 = vst [vmem:[#allocation2 + $0x70] sm:$0xff] 0.0
      %66 = vst [vmem:[#allocation2 + $0x78] sm:$0xff] 0.0
      %67 = vst [vmem:[#allocation2 + $0x80] sm:$0xff] 0.0
      %68 = vst [vmem:[#allocation2 + $0x88] sm:$0xff] 0.0
      %69 = vst [vmem:[#allocation2 + $0x90] sm:$0xff] 0.0
      %70 = vst [vmem:[#allocation2 + $0x98] sm:$0xff] 0.0
      %71 = vst [vmem:[#allocation2 + $0xa0] sm:$0xff] 0.0
      %72 = vst [vmem:[#allocation2 + $0xa8] sm:$0xff] 0.0
      %73 = vst [vmem:[#allocation2 + $0xb0] sm:$0xff] 0.0
      %74 = vst [vmem:[#allocation2 + $0xb8] sm:$0xff] 0.0
      %75 = vst [vmem:[#allocation2 + $0xc0] sm:$0xff] 0.0
      %76 = vst [vmem:[#allocation2 + $0xc8] sm:$0xff] 0.0
      %77 = vst [vmem:[#allocation2 + $0xd0] sm:$0xff] 0.0
      %78 = vst [vmem:[#allocation2 + $0xd8] sm:$0xff] 0.0
      %79 = vst [vmem:[#allocation2 + $0xe0] sm:$0xff] 0.0
      %80 = vst [vmem:[#allocation2 + $0xe8] sm:$0xff] 0.0
      %81 = vst [vmem:[#allocation2 + $0xf0] sm:$0xff] 0.0
      %82 = vst [vmem:[#allocation2 + $0xf8] sm:$0xff] 0.0
      %83 = vst [vmem:[#allocation2 + $0x100] sm:$0xff] 0.0
      %84 = vst [vmem:[#allocation2 + $0x108] sm:$0xff] 0.0
      %85 = vst [vmem:[#allocation2 + $0x110] sm:$0xff] 0.0
      %86 = vst [vmem:[#allocation2 + $0x118] sm:$0xff] 0.0
      %87 = vst [vmem:[#allocation2 + $0x120] sm:$0xff] 0.0
      %88 = vst [vmem:[#allocation2 + $0x128] sm:$0xff] 0.0
      %89 = vst [vmem:[#allocation2 + $0x130] sm:$0xff] 0.0
      %90 = vst [vmem:[#allocation2 + $0x138] sm:$0xff] 0.0
      %91 = vst [vmem:[#allocation2 + $0x140] sm:$0xff] 0.0
      %92 = vst [vmem:[#allocation2 + $0x148] sm:$0xff] 0.0
      %93 = vst [vmem:[#allocation2 + $0x150] sm:$0xff] 0.0
      %94 = vst [vmem:[#allocation2 + $0x158] sm:$0xff] 0.0
      %95 = vst [vmem:[#allocation2 + $0x160] sm:$0xff] 0.0
      %96 = vst [vmem:[#allocation2 + $0x168] sm:$0xff] 0.0
      %97 = vst [vmem:[#allocation2 + $0x170] sm:$0xff] 0.0
      %98 = vst [vmem:[#allocation2 + $0x178] sm:$0xff] 0.0
      %99 = vst [vmem:[#allocation2 + $0x180] sm:$0xff] 0.0
      %100 = vst [vmem:[#allocation2 + $0x188] sm:$0xff] 0.0
      %101 = vst [vmem:[#allocation2 + $0x190] sm:$0xff] 0.0
      %102 = vst [vmem:[#allocation2 + $0x198] sm:$0xff] 0.0
      %103 = vst [vmem:[#allocation2 + $0x1a0] sm:$0xff] 0.0
      %104 = vst [vmem:[#allocation2 + $0x1a8] sm:$0xff] 0.0
      %105 = vst [vmem:[#allocation2 + $0x1b0] sm:$0xff] 0.0
      %106 = vst [vmem:[#allocation2 + $0x1b8] sm:$0xff] 0.0
      %107 = vst [vmem:[#allocation2 + $0x1c0] sm:$0xff] 0.0
      %108 = vst [vmem:[#allocation2 + $0x1c8] sm:$0xff] 0.0
      %109 = vst [vmem:[#allocation2 + $0x1d0] sm:$0xff] 0.0
      %110 = vst [vmem:[#allocation2 + $0x1d8] sm:$0xff] 0.0
      %111 = vst [vmem:[#allocation2 + $0x1e0] sm:$0xff] 0.0
      %112 = vst [vmem:[#allocation2 + $0x1e8] sm:$0xff] 0.0
      %113 = vst [vmem:[#allocation2 + $0x1f0] sm:$0xff] 0.0
      %114 = vst [vmem:[#allocation2 + $0x1f8] sm:$0xff] 0.0
    $region29: #{tpu_custom_call.1} parent=1 // pred_fallthru
      _
    %v115 = vld [vmem:[#allocation2] sm:$0xff]
    %v116 = vld [vmem:[#allocation2 + $0x8] sm:$0xff]
    %v117 = vld [vmem:[#allocation2 + $0x10] sm:$0xff]
    %v118 = vld [vmem:[#allocation2 + $0x18] sm:$0xff]
    %v119 = vld [vmem:[#allocation2 + $0x20] sm:$0xff]
    %v120 = vld [vmem:[#allocation2 + $0x28] sm:$0xff]
    %v121 = vld [vmem:[#allocation2 + $0x30] sm:$0xff]
    %v122 = vld [vmem:[#allocation2 + $0x38] sm:$0xff]
    %v123 = vld [vmem:[#allocation2 + $0x40] sm:$0xff]
    %v124 = vld [vmem:[#allocation2 + $0x48] sm:$0xff]
    %v125 = vld [vmem:[#allocation2 + $0x50] sm:$0xff]
    %v126 = vld [vmem:[#allocation2 + $0x58] sm:$0xff]
    %v127 = vld [vmem:[#allocation2 + $0x60] sm:$0xff]
    %v128 = vld [vmem:[#allocation2 + $0x68] sm:$0xff]
    %v129 = vld [vmem:[#allocation2 + $0x70] sm:$0xff]
    %v130 = vld [vmem:[#allocation2 + $0x78] sm:$0xff]
    %v131 = vld [vmem:[#allocation2 + $0x80] sm:$0xff]
    %v132 = vld [vmem:[#allocation2 + $0x88] sm:$0xff]
    %v133 = vld [vmem:[#allocation2 + $0x90] sm:$0xff]
    %v134 = vld [vmem:[#allocation2 + $0x98] sm:$0xff]
    %v135 = vld [vmem:[#allocation2 + $0xa0] sm:$0xff]
    %v136 = vld [vmem:[#allocation2 + $0xa8] sm:$0xff]
    %v137 = vld [vmem:[#allocation2 + $0xb0] sm:$0xff]
    %v138 = vld [vmem:[#allocation2 + $0xb8] sm:$0xff]
    %v139 = vld [vmem:[#allocation2 + $0xc0] sm:$0xff]
    %v140 = vld [vmem:[#allocation2 + $0xc8] sm:$0xff]
    %v141 = vld [vmem:[#allocation2 + $0xd0] sm:$0xff]
    %v142 = vld [vmem:[#allocation2 + $0xd8] sm:$0xff]
    %v143 = vld [vmem:[#allocation2 + $0xe0] sm:$0xff]
    %v144 = vld [vmem:[#allocation2 + $0xe8] sm:$0xff]
    %v145 = vld [vmem:[#allocation2 + $0xf0] sm:$0xff]
    %v146 = vld [vmem:[#allocation2 + $0xf8] sm:$0xff]
    %v147 = vld [vmem:[#allocation2 + $0x100] sm:$0xff]
    %v148 = vld [vmem:[#allocation2 + $0x108] sm:$0xff]
    %v149 = vld [vmem:[#allocation2 + $0x110] sm:$0xff]
    %v150 = vld [vmem:[#allocation2 + $0x118] sm:$0xff]
    %v151 = vld [vmem:[#allocation2 + $0x120] sm:$0xff]
    %v152 = vld [vmem:[#allocation2 + $0x128] sm:$0xff]
    %v153 = vld [vmem:[#allocation2 + $0x130] sm:$0xff]
    %v154 = vld [vmem:[#allocation2 + $0x138] sm:$0xff]
    %v155 = vld [vmem:[#allocation2 + $0x140] sm:$0xff]
    %v156 = vld [vmem:[#allocation2 + $0x148] sm:$0xff]
    %v157 = vld [vmem:[#allocation2 + $0x150] sm:$0xff]
    %v158 = vld [vmem:[#allocation2 + $0x158] sm:$0xff]
    %v159 = vld [vmem:[#allocation2 + $0x160] sm:$0xff]
    %v160 = vld [vmem:[#allocation2 + $0x168] sm:$0xff]
    %v161 = vld [vmem:[#allocation2 + $0x170] sm:$0xff]
    %v162 = vld [vmem:[#allocation2 + $0x178] sm:$0xff]
    %v163 = vld [vmem:[#allocation2 + $0x180] sm:$0xff]
    %v164 = vld [vmem:[#allocation2 + $0x188] sm:$0xff]
    %v165 = vld [vmem:[#allocation2 + $0x190] sm:$0xff]
    %v166 = vld [vmem:[#allocation2 + $0x198] sm:$0xff]
    %v167 = vld [vmem:[#allocation2 + $0x1a0] sm:$0xff]
    %v168 = vld [vmem:[#allocation2 + $0x1a8] sm:$0xff]
    %v169 = vld [vmem:[#allocation2 + $0x1b0] sm:$0xff]
    %v170 = vld [vmem:[#allocation2 + $0x1b8] sm:$0xff]
    %v171 = vld [vmem:[#allocation2 + $0x1c0] sm:$0xff]
    %v172 = vld [vmem:[#allocation2 + $0x1c8] sm:$0xff]
    %v173 = vld [vmem:[#allocation2 + $0x1d0] sm:$0xff]
    %v174 = vld [vmem:[#allocation2 + $0x1d8] sm:$0xff]
    %v175 = vld [vmem:[#allocation2 + $0x1e0] sm:$0xff]
    %v176 = vld [vmem:[#allocation2 + $0x1e8] sm:$0xff]
    %v177 = vld [vmem:[#allocation2 + $0x1f0] sm:$0xff]
    %v178 = vld [vmem:[#allocation2 + $0x1f8] sm:$0xff]
    %v179 = vld [vmem:[#allocation3] sm:$0xf]
    %v180 = vld [vmem:[#allocation3 + $0x4] sm:$0xf]
    %v181 = vld [vmem:[#allocation3 + $0x8] sm:$0xf]
    %v182 = vld [vmem:[#allocation3 + $0xc] sm:$0xf]
    %v183 = vld [vmem:[#allocation3 + $0x10] sm:$0xf]
    %v184 = vld [vmem:[#allocation3 + $0x14] sm:$0xf]
    %v185 = vld [vmem:[#allocation3 + $0x18] sm:$0xf]
    %v186 = vld [vmem:[#allocation3 + $0x1c] sm:$0xf]
    %v187 = vld [vmem:[#allocation3 + $0x20] sm:$0xf]
    %v188 = vld [vmem:[#allocation3 + $0x24] sm:$0xf]
    %v189 = vld [vmem:[#allocation3 + $0x28] sm:$0xf]
    %v190 = vld [vmem:[#allocation3 + $0x2c] sm:$0xf]
    %v191 = vld [vmem:[#allocation3 + $0x30] sm:$0xf]
    %v192 = vld [vmem:[#allocation3 + $0x34] sm:$0xf]
    %v193 = vld [vmem:[#allocation3 + $0x38] sm:$0xf]
    %v194 = vld [vmem:[#allocation3 + $0x3c] sm:$0xf]
    %v195 = vld [vmem:[#allocation3 + $0x40] sm:$0xf]
    %v196 = vld [vmem:[#allocation3 + $0x44] sm:$0xf]
    %v197 = vld [vmem:[#allocation3 + $0x48] sm:$0xf]
    %v198 = vld [vmem:[#allocation3 + $0x4c] sm:$0xf]
    %v199 = vld [vmem:[#allocation3 + $0x50] sm:$0xf]
    %v200 = vld [vmem:[#allocation3 + $0x54] sm:$0xf]
    %v201 = vld [vmem:[#allocation3 + $0x58] sm:$0xf]
    %v202 = vld [vmem:[#allocation3 + $0x5c] sm:$0xf]
    %v203 = vld [vmem:[#allocation3 + $0x60] sm:$0xf]
    %v204 = vld [vmem:[#allocation3 + $0x64] sm:$0xf]
    %v205 = vld [vmem:[#allocation3 + $0x68] sm:$0xf]
    %v206 = vld [vmem:[#allocation3 + $0x6c] sm:$0xf]
    %v207 = vld [vmem:[#allocation3 + $0x70] sm:$0xf]
    %v208 = vld [vmem:[#allocation3 + $0x74] sm:$0xf]
    %v209 = vld [vmem:[#allocation3 + $0x78] sm:$0xf]
    %v210 = vld [vmem:[#allocation3 + $0x7c] sm:$0xf]
    %v211 = vld [vmem:[#allocation3 + $0x80] sm:$0xf]
    %v212 = vld [vmem:[#allocation3 + $0x84] sm:$0xf]
    %v213 = vld [vmem:[#allocation3 + $0x88] sm:$0xf]
    %v214 = vld [vmem:[#allocation3 + $0x8c] sm:$0xf]
    %v215 = vld [vmem:[#allocation3 + $0x90] sm:$0xf]
    %v216 = vld [vmem:[#allocation3 + $0x94] sm:$0xf]
    %v217 = vld [vmem:[#allocation3 + $0x98] sm:$0xf]
    %v218 = vld [vmem:[#allocation3 + $0x9c] sm:$0xf]
    %v219 = vld [vmem:[#allocation3 + $0xa0] sm:$0xf]
    %v220 = vld [vmem:[#allocation3 + $0xa4] sm:$0xf]
    %v221 = vld [vmem:[#allocation3 + $0xa8] sm:$0xf]
    %v222 = vld [vmem:[#allocation3 + $0xac] sm:$0xf]
    %v223 = vld [vmem:[#allocation3 + $0xb0] sm:$0xf]
    %v224 = vld [vmem:[#allocation3 + $0xb4] sm:$0xf]
    %v225 = vld [vmem:[#allocation3 + $0xb8] sm:$0xf]
    %v226 = vld [vmem:[#allocation3 + $0xbc] sm:$0xf]
    %v227 = vld [vmem:[#allocation3 + $0xc0] sm:$0xf]
    %v228 = vld [vmem:[#allocation3 + $0xc4] sm:$0xf]
    %v229 = vld [vmem:[#allocation3 + $0xc8] sm:$0xf]
    %v230 = vld [vmem:[#allocation3 + $0xcc] sm:$0xf]
    %v231 = vld [vmem:[#allocation3 + $0xd0] sm:$0xf]
    %v232 = vld [vmem:[#allocation3 + $0xd4] sm:$0xf]
    %v233 = vld [vmem:[#allocation3 + $0xd8] sm:$0xf]
    %v234 = vld [vmem:[#allocation3 + $0xdc] sm:$0xf]
    %v235 = vld [vmem:[#allocation3 + $0xe0] sm:$0xf]
    %v236 = vld [vmem:[#allocation3 + $0xe4] sm:$0xf]
    %v237 = vld [vmem:[#allocation3 + $0xe8] sm:$0xf]
    %v238 = vld [vmem:[#allocation3 + $0xec] sm:$0xf]
    %v239 = vld [vmem:[#allocation3 + $0xf0] sm:$0xf]
    %v240 = vld [vmem:[#allocation3 + $0xf4] sm:$0xf]
    %v241 = vld [vmem:[#allocation3 + $0xf8] sm:$0xf]
    %v242 = vld [vmem:[#allocation3 + $0xfc] sm:$0xf]
    %v243 = vld [vmem:[#allocation6] sm:$0xf]
    %v244 = vld [vmem:[#allocation6 + $0x4] sm:$0xf]
    %v245 = vld [vmem:[#allocation6 + $0x8] sm:$0xf]
    %v246 = vld [vmem:[#allocation6 + $0xc] sm:$0xf]
    %v247 = vld [vmem:[#allocation6 + $0x10] sm:$0xf]
    %v248 = vld [vmem:[#allocation6 + $0x14] sm:$0xf]
    %v249 = vld [vmem:[#allocation6 + $0x18] sm:$0xf]
    %v250 = vld [vmem:[#allocation6 + $0x1c] sm:$0xf]
    %v251 = vld [vmem:[#allocation6 + $0x20] sm:$0xf]
    %v252 = vld [vmem:[#allocation6 + $0x24] sm:$0xf]
    %v253 = vld [vmem:[#allocation6 + $0x28] sm:$0xf]
    %v254 = vld [vmem:[#allocation6 + $0x2c] sm:$0xf]
    %v255 = vld [vmem:[#allocation6 + $0x30] sm:$0xf]
    %v256 = vld [vmem:[#allocation6 + $0x34] sm:$0xf]
    %v257 = vld [vmem:[#allocation6 + $0x38] sm:$0xf]
    %v258 = vld [vmem:[#allocation6 + $0x3c] sm:$0xf]
    %v323 = vunpack.c.l.b16 %v179
    %v324 = vunpack.c.l.b16 %v180
    %v325 = vunpack.c.l.b16 %v181
    %v326 = vunpack.c.l.b16 %v182
    %v327 = vunpack.c.l.b16 %v183
    %v328 = vunpack.c.l.b16 %v184
    %v329 = vunpack.c.l.b16 %v185
    %v330 = vunpack.c.l.b16 %v186
    %v331 = vunpack.c.l.b16 %v187
    %v332 = vunpack.c.l.b16 %v188
    %v333 = vunpack.c.l.b16 %v189
    %v334 = vunpack.c.l.b16 %v190
    %v335 = vunpack.c.l.b16 %v191
    %v336 = vunpack.c.l.b16 %v192
    %v337 = vunpack.c.l.b16 %v193
    %v338 = vunpack.c.l.b16 %v194
    %v339 = vunpack.c.l.b16 %v195
    %v340 = vunpack.c.l.b16 %v196
    %v341 = vunpack.c.l.b16 %v197
    %v342 = vunpack.c.l.b16 %v198
    %v343 = vunpack.c.l.b16 %v199
    %v344 = vunpack.c.l.b16 %v200
    %v345 = vunpack.c.l.b16 %v201
    %v346 = vunpack.c.l.b16 %v202
    %v347 = vunpack.c.l.b16 %v203
    %v348 = vunpack.c.l.b16 %v204
    %v349 = vunpack.c.l.b16 %v205
    %v350 = vunpack.c.l.b16 %v206
    %v351 = vunpack.c.l.b16 %v207
    %v352 = vunpack.c.l.b16 %v208
    %v353 = vunpack.c.l.b16 %v209
    %v354 = vunpack.c.l.b16 %v210
    %v355 = vunpack.c.l.b16 %v211
    %v356 = vunpack.c.l.b16 %v212
    %v357 = vunpack.c.l.b16 %v213
    %v358 = vunpack.c.l.b16 %v214
    %v359 = vunpack.c.l.b16 %v215
    %v360 = vunpack.c.l.b16 %v216
    %v361 = vunpack.c.l.b16 %v217
    %v362 = vunpack.c.l.b16 %v218
    %v363 = vunpack.c.l.b16 %v219
    %v364 = vunpack.c.l.b16 %v220
    %v365 = vunpack.c.l.b16 %v221
    %v366 = vunpack.c.l.b16 %v222
    %v367 = vunpack.c.l.b16 %v223
    %v368 = vunpack.c.l.b16 %v224
    %v369 = vunpack.c.l.b16 %v225
    %v370 = vunpack.c.l.b16 %v226
    %v371 = vunpack.c.l.b16 %v227
    %v372 = vunpack.c.l.b16 %v228
    %v373 = vunpack.c.l.b16 %v229
    %v374 = vunpack.c.l.b16 %v230
    %v375 = vunpack.c.l.b16 %v231
    %v376 = vunpack.c.l.b16 %v232
    %v377 = vunpack.c.l.b16 %v233
    %v378 = vunpack.c.l.b16 %v234
    %v379 = vunpack.c.l.b16 %v235
    %v380 = vunpack.c.l.b16 %v236
    %v381 = vunpack.c.l.b16 %v237
    %v382 = vunpack.c.l.b16 %v238
    %v383 = vunpack.c.l.b16 %v239
    %v384 = vunpack.c.l.b16 %v240
    %v385 = vunpack.c.l.b16 %v241
    %v386 = vunpack.c.l.b16 %v242
    %v387 = vpack.c.b16 %v324, %v323
    %v388 = vpack.c.b16 %v326, %v325
    %v389 = vpack.c.b16 %v328, %v327
    %v390 = vpack.c.b16 %v330, %v329
    %v391 = vpack.c.b16 %v332, %v331
    %v392 = vpack.c.b16 %v334, %v333
    %v393 = vpack.c.b16 %v336, %v335
    %v394 = vpack.c.b16 %v338, %v337
    %v395 = vpack.c.b16 %v340, %v339
    %v396 = vpack.c.b16 %v342, %v341
    %v397 = vpack.c.b16 %v344, %v343
    %v398 = vpack.c.b16 %v346, %v345
    %v399 = vpack.c.b16 %v348, %v347
    %v400 = vpack.c.b16 %v350, %v349
    %v401 = vpack.c.b16 %v352, %v351
    %v402 = vpack.c.b16 %v354, %v353
    %v403 = vpack.c.b16 %v356, %v355
    %v404 = vpack.c.b16 %v358, %v357
    %v405 = vpack.c.b16 %v360, %v359
    %v406 = vpack.c.b16 %v362, %v361
    %v407 = vpack.c.b16 %v364, %v363
    %v408 = vpack.c.b16 %v366, %v365
    %v409 = vpack.c.b16 %v368, %v367
    %v410 = vpack.c.b16 %v370, %v369
    %v411 = vpack.c.b16 %v372, %v371
    %v412 = vpack.c.b16 %v374, %v373
    %v413 = vpack.c.b16 %v376, %v375
    %v414 = vpack.c.b16 %v378, %v377
    %v415 = vpack.c.b16 %v380, %v379
    %v416 = vpack.c.b16 %v382, %v381
    %v417 = vpack.c.b16 %v384, %v383
    %v418 = vpack.c.b16 %v386, %v385
    %v467 = vunpack.c.l.b16 %v243
    %v468 = vunpack.c.l.b16 %v244
    %v469 = vunpack.c.l.b16 %v245
    %v470 = vunpack.c.l.b16 %v246
    %v471 = vunpack.c.l.b16 %v247
    %v472 = vunpack.c.l.b16 %v248
    %v473 = vunpack.c.l.b16 %v249
    %v474 = vunpack.c.l.b16 %v250
    %v475 = vunpack.c.l.b16 %v251
    %v476 = vunpack.c.l.b16 %v252
    %v477 = vunpack.c.l.b16 %v253
    %v478 = vunpack.c.l.b16 %v254
    %v479 = vunpack.c.l.b16 %v255
    %v480 = vunpack.c.l.b16 %v256
    %v481 = vunpack.c.l.b16 %v257
    %v482 = vunpack.c.l.b16 %v258
    %v483 = vpack.c.b16 %v468, %v467
    %v484 = vpack.c.b16 %v470, %v469
    %v485 = vpack.c.b16 %v472, %v471
    %v486 = vpack.c.b16 %v474, %v473
    %v487 = vpack.c.b16 %v476, %v475
    %v488 = vpack.c.b16 %v478, %v477
    %v489 = vpack.c.b16 %v480, %v479
    %v490 = vpack.c.b16 %v482, %v481
    %499 = vmatprep.subr.bf16.mxu0 0
    %500 = vmatpush1.bf16.msra.mxu0 %v483
    %501 = vmatprep.subr.bf16.mxu0 0
    %502 = vmatpush1.bf16.msra.mxu0 %v484
    %503 = vmatprep.subr.bf16.mxu0 0
    %504 = vmatpush1.bf16.msra.mxu0 %v485
    %505 = vmatprep.subr.bf16.mxu0 0
    %506 = vmatpush1.bf16.msra.mxu0 %v486
    %507 = vmatprep.subr.bf16.mxu0 0
    %508 = vmatpush1.bf16.msra.mxu0 %v487
    %509 = vmatprep.subr.bf16.mxu0 0
    %510 = vmatpush1.bf16.msra.mxu0 %v488
    %511 = vmatprep.subr.bf16.mxu0 0
    %512 = vmatpush1.bf16.msra.mxu0 %v489
    %513 = vmatprep.subr.bf16.mxu0 0
    %514 = vmatpush1.bf16.msra.mxu0 %v490
    %515 = vmatprep.subr.bf16.mxu0 0
    %516 = vmatpush1.bf16.msra.mxu0 0
    %517 = vmatprep.subr.bf16.mxu0 0
    %518 = vmatpush1.bf16.msra.mxu0 0
    %519 = vmatprep.subr.bf16.mxu0 0
    %520 = vmatpush1.bf16.msra.mxu0 0
    %521 = vmatprep.subr.bf16.mxu0 0
    %522 = vmatpush1.bf16.msra.mxu0 0
    %523 = vmatprep.subr.bf16.mxu0 0
    %524 = vmatpush1.bf16.msra.mxu0 0
    %525 = vmatprep.subr.bf16.mxu0 0
    %526 = vmatpush1.bf16.msra.mxu0 0
    %527 = vmatprep.subr.bf16.mxu0 0
    %528 = vmatpush1.bf16.msra.mxu0 0
    %529 = vmatprep.subr.bf16.mxu0 0
    %530 = vmatpush1.bf16.msra.mxu0 0
    %531 = vmatprep.mubr.bf16.mxu0 0
    %532 = vmatmul.mubr.bf16.gmra.mrb[0].mxu0 %v387
    %v533 = vpop.f32.mrb[0].mxu0
    %v534 = vadd.f32 0.0, %v533
    %v535 = vpop.f32.mrb[0].mxu0
    %v536 = vpop.f32.mrb[0].mxu0
    %v537 = vadd.f32 0.0, %v536
    %v538 = vpop.f32.mrb[0].mxu0
    %539 = vmatprep.mubr.bf16.mxu0 0
    %540 = vmatmul.mubr.bf16.gmra.mrb[0].mxu0 %v388
    %v541 = vpop.f32.mrb[0].mxu0
    %v542 = vadd.f32 0.0, %v541
    %v543 = vpop.f32.mrb[0].mxu0
    %v544 = vpop.f32.mrb[0].mxu0
    %v545 = vadd.f32 0.0, %v544
    %v546 = vpop.f32.mrb[0].mxu0
    %547 = vmatprep.mubr.bf16.mxu0 0
    %548 = vmatmul.mubr.bf16.gmra.mrb[0].mxu0 %v389
    %v549 = vpop.f32.mrb[0].mxu0
    %v550 = vadd.f32 0.0, %v549
    %v551 = vpop.f32.mrb[0].mxu0
    %v552 = vpop.f32.mrb[0].mxu0
    %v553 = vadd.f32 0.0, %v552
    %v554 = vpop.f32.mrb[0].mxu0
    %555 = vmatprep.mubr.bf16.mxu0 0
    %556 = vmatmul.mubr.bf16.gmra.mrb[0].mxu0 %v390
    %v557 = vpop.f32.mrb[0].mxu0
    %v558 = vadd.f32 0.0, %v557
    %v559 = vpop.f32.mrb[0].mxu0
    %v560 = vpop.f32.mrb[0].mxu0
    %v561 = vadd.f32 0.0, %v560
    %v562 = vpop.f32.mrb[0].mxu0
    %563 = vmatprep.mubr.bf16.mxu0 0
    %564 = vmatmul.mubr.bf16.gmra.mrb[0].mxu0 %v391
    %v565 = vpop.f32.mrb[0].mxu0
    %v566 = vadd.f32 0.0, %v565
    %v567 = vpop.f32.mrb[0].mxu0
    %v568 = vpop.f32.mrb[0].mxu0
    %v569 = vadd.f32 0.0, %v568
    %v570 = vpop.f32.mrb[0].mxu0
    %571 = vmatprep.mubr.bf16.mxu0 0
    %572 = vmatmul.mubr.bf16.gmra.mrb[0].mxu0 %v392
    %v573 = vpop.f32.mrb[0].mxu0
    %v574 = vadd.f32 0.0, %v573
    %v575 = vpop.f32.mrb[0].mxu0
    %v576 = vpop.f32.mrb[0].mxu0
    %v577 = vadd.f32 0.0, %v576
    %v578 = vpop.f32.mrb[0].mxu0
    %579 = vmatprep.mubr.bf16.mxu0 0
    %580 = vmatmul.mubr.bf16.gmra.mrb[0].mxu0 %v393
    %v581 = vpop.f32.mrb[0].mxu0
    %v582 = vadd.f32 0.0, %v581
    %v583 = vpop.f32.mrb[0].mxu0
    %v584 = vpop.f32.mrb[0].mxu0
    %v585 = vadd.f32 0.0, %v584
    %v586 = vpop.f32.mrb[0].mxu0
    %587 = vmatprep.mubr.bf16.mxu0 0
    %588 = vmatmul.mubr.bf16.gmra.mrb[0].mxu0 %v394
    %v589 = vpop.f32.mrb[0].mxu0
    %v590 = vadd.f32 0.0, %v589
    %v591 = vpop.f32.mrb[0].mxu0
    %v592 = vpop.f32.mrb[0].mxu0
    %v593 = vadd.f32 0.0, %v592
    %v594 = vpop.f32.mrb[0].mxu0
    %595 = vmatprep.mubr.bf16.mxu0 0
    %596 = vmatmul.mubr.bf16.gmra.mrb[0].mxu0 %v395
    %v597 = vpop.f32.mrb[0].mxu0
    %v598 = vadd.f32 0.0, %v597
    %v599 = vpop.f32.mrb[0].mxu0
    %v600 = vpop.f32.mrb[0].mxu0
    %v601 = vadd.f32 0.0, %v600
    %v602 = vpop.f32.mrb[0].mxu0
    %603 = vmatprep.mubr.bf16.mxu0 0
    %604 = vmatmul.mubr.bf16.gmra.mrb[0].mxu0 %v396
    %v605 = vpop.f32.mrb[0].mxu0
    %v606 = vadd.f32 0.0, %v605
    %v607 = vpop.f32.mrb[0].mxu0
    %v608 = vpop.f32.mrb[0].mxu0
    %v609 = vadd.f32 0.0, %v608
    %v610 = vpop.f32.mrb[0].mxu0
    %611 = vmatprep.mubr.bf16.mxu0 0
    %612 = vmatmul.mubr.bf16.gmra.mrb[0].mxu0 %v397
    %v613 = vpop.f32.mrb[0].mxu0
    %v614 = vadd.f32 0.0, %v613
    %v615 = vpop.f32.mrb[0].mxu0
    %v616 = vpop.f32.mrb[0].mxu0
    %v617 = vadd.f32 0.0, %v616
    %v618 = vpop.f32.mrb[0].mxu0
    %619 = vmatprep.mubr.bf16.mxu0 0
    %620 = vmatmul.mubr.bf16.gmra.mrb[0].mxu0 %v398
    %v621 = vpop.f32.mrb[0].mxu0
    %v622 = vadd.f32 0.0, %v621
    %v623 = vpop.f32.mrb[0].mxu0
    %v624 = vpop.f32.mrb[0].mxu0
    %v625 = vadd.f32 0.0, %v624
    %v626 = vpop.f32.mrb[0].mxu0
    %627 = vmatprep.mubr.bf16.mxu0 0
    %628 = vmatmul.mubr.bf16.gmra.mrb[0].mxu0 %v399
    %v629 = vpop.f32.mrb[0].mxu0
    %v630 = vadd.f32 0.0, %v629
    %v631 = vpop.f32.mrb[0].mxu0
    %v632 = vpop.f32.mrb[0].mxu0
    %v633 = vadd.f32 0.0, %v632
    %v634 = vpop.f32.mrb[0].mxu0
    %635 = vmatprep.mubr.bf16.mxu0 0
    %636 = vmatmul.mubr.bf16.gmra.mrb[0].mxu0 %v400
    %v637 = vpop.f32.mrb[0].mxu0
    %v638 = vadd.f32 0.0, %v637
    %v639 = vpop.f32.mrb[0].mxu0
    %v640 = vpop.f32.mrb[0].mxu0
    %v641 = vadd.f32 0.0, %v640
    %v642 = vpop.f32.mrb[0].mxu0
    %643 = vmatprep.mubr.bf16.mxu0 0
    %644 = vmatmul.mubr.bf16.gmra.mrb[0].mxu0 %v401
    %v645 = vpop.f32.mrb[0].mxu0
    %v646 = vadd.f32 0.0, %v645
    %v647 = vpop.f32.mrb[0].mxu0
    %v648 = vpop.f32.mrb[0].mxu0
    %v649 = vadd.f32 0.0, %v648
    %v650 = vpop.f32.mrb[0].mxu0
    %651 = vmatprep.mubr.bf16.mxu0 0
    %652 = vmatmul.mubr.bf16.gmra.mrb[0].mxu0 %v402
    %v653 = vpop.f32.mrb[0].mxu0
    %v654 = vadd.f32 0.0, %v653
    %v655 = vpop.f32.mrb[0].mxu0
    %v656 = vpop.f32.mrb[0].mxu0
    %v657 = vadd.f32 0.0, %v656
    %v658 = vpop.f32.mrb[0].mxu0
    %659 = vmatprep.mubr.bf16.mxu0 0
    %660 = vmatmul.mubr.bf16.gmra.mrb[0].mxu0 %v403
    %v661 = vpop.f32.mrb[0].mxu0
    %v662 = vadd.f32 0.0, %v661
    %v663 = vpop.f32.mrb[0].mxu0
    %v664 = vpop.f32.mrb[0].mxu0
    %v665 = vadd.f32 0.0, %v664
    %v666 = vpop.f32.mrb[0].mxu0
    %667 = vmatprep.mubr.bf16.mxu0 0
    %668 = vmatmul.mubr.bf16.gmra.mrb[0].mxu0 %v404
    %v669 = vpop.f32.mrb[0].mxu0
    %v670 = vadd.f32 0.0, %v669
    %v671 = vpop.f32.mrb[0].mxu0
    %v672 = vpop.f32.mrb[0].mxu0
    %v673 = vadd.f32 0.0, %v672
    %v674 = vpop.f32.mrb[0].mxu0
    %675 = vmatprep.mubr.bf16.mxu0 0
    %676 = vmatmul.mubr.bf16.gmra.mrb[0].mxu0 %v405
    %v677 = vpop.f32.mrb[0].mxu0
    %v678 = vadd.f32 0.0, %v677
    %v679 = vpop.f32.mrb[0].mxu0
    %v680 = vpop.f32.mrb[0].mxu0
    %v681 = vadd.f32 0.0, %v680
    %v682 = vpop.f32.mrb[0].mxu0
    %683 = vmatprep.mubr.bf16.mxu0 0
    %684 = vmatmul.mubr.bf16.gmra.mrb[0].mxu0 %v406
    %v685 = vpop.f32.mrb[0].mxu0
    %v686 = vadd.f32 0.0, %v685
    %v687 = vpop.f32.mrb[0].mxu0
    %v688 = vpop.f32.mrb[0].mxu0
    %v689 = vadd.f32 0.0, %v688
    %v690 = vpop.f32.mrb[0].mxu0
    %691 = vmatprep.mubr.bf16.mxu0 0
    %692 = vmatmul.mubr.bf16.gmra.mrb[0].mxu0 %v407
    %v693 = vpop.f32.mrb[0].mxu0
    %v694 = vadd.f32 0.0, %v693
    %v695 = vpop.f32.mrb[0].mxu0
    %v696 = vpop.f32.mrb[0].mxu0
    %v697 = vadd.f32 0.0, %v696
    %v698 = vpop.f32.mrb[0].mxu0
    %699 = vmatprep.mubr.bf16.mxu0 0
    %700 = vmatmul.mubr.bf16.gmra.mrb[0].mxu0 %v408
    %v701 = vpop.f32.mrb[0].mxu0
    %v702 = vadd.f32 0.0, %v701
    %v703 = vpop.f32.mrb[0].mxu0
    %v704 = vpop.f32.mrb[0].mxu0
    %v705 = vadd.f32 0.0, %v704
    %v706 = vpop.f32.mrb[0].mxu0
    %707 = vmatprep.mubr.bf16.mxu0 0
    %708 = vmatmul.mubr.bf16.gmra.mrb[0].mxu0 %v409
    %v709 = vpop.f32.mrb[0].mxu0
    %v710 = vadd.f32 0.0, %v709
    %v711 = vpop.f32.mrb[0].mxu0
    %v712 = vpop.f32.mrb[0].mxu0
    %v713 = vadd.f32 0.0, %v712
    %v714 = vpop.f32.mrb[0].mxu0
    %715 = vmatprep.mubr.bf16.mxu0 0
    %716 = vmatmul.mubr.bf16.gmra.mrb[0].mxu0 %v410
    %v717 = vpop.f32.mrb[0].mxu0
    %v718 = vadd.f32 0.0, %v717
    %v719 = vpop.f32.mrb[0].mxu0
    %v720 = vpop.f32.mrb[0].mxu0
    %v721 = vadd.f32 0.0, %v720
    %v722 = vpop.f32.mrb[0].mxu0
    %723 = vmatprep.mubr.bf16.mxu0 0
    %724 = vmatmul.mubr.bf16.gmra.mrb[0].mxu0 %v411
    %v725 = vpop.f32.mrb[0].mxu0
    %v726 = vadd.f32 0.0, %v725
    %v727 = vpop.f32.mrb[0].mxu0
    %v728 = vpop.f32.mrb[0].mxu0
    %v729 = vadd.f32 0.0, %v728
    %v730 = vpop.f32.mrb[0].mxu0
    %731 = vmatprep.mubr.bf16.mxu0 0
    %732 = vmatmul.mubr.bf16.gmra.mrb[0].mxu0 %v412
    %v733 = vpop.f32.mrb[0].mxu0
    %v734 = vadd.f32 0.0, %v733
    %v735 = vpop.f32.mrb[0].mxu0
    %v736 = vpop.f32.mrb[0].mxu0
    %v737 = vadd.f32 0.0, %v736
    %v738 = vpop.f32.mrb[0].mxu0
    %739 = vmatprep.mubr.bf16.mxu0 0
    %740 = vmatmul.mubr.bf16.gmra.mrb[0].mxu0 %v413
    %v741 = vpop.f32.mrb[0].mxu0
    %v742 = vadd.f32 0.0, %v741
    %v743 = vpop.f32.mrb[0].mxu0
    %v744 = vpop.f32.mrb[0].mxu0
    %v745 = vadd.f32 0.0, %v744
    %v746 = vpop.f32.mrb[0].mxu0
    %747 = vmatprep.mubr.bf16.mxu0 0
    %748 = vmatmul.mubr.bf16.gmra.mrb[0].mxu0 %v414
    %v749 = vpop.f32.mrb[0].mxu0
    %v750 = vadd.f32 0.0, %v749
    %v751 = vpop.f32.mrb[0].mxu0
    %v752 = vpop.f32.mrb[0].mxu0
    %v753 = vadd.f32 0.0, %v752
    %v754 = vpop.f32.mrb[0].mxu0
    %755 = vmatprep.mubr.bf16.mxu0 0
    %756 = vmatmul.mubr.bf16.gmra.mrb[0].mxu0 %v415
    %v757 = vpop.f32.mrb[0].mxu0
    %v758 = vadd.f32 0.0, %v757
    %v759 = vpop.f32.mrb[0].mxu0
    %v760 = vpop.f32.mrb[0].mxu0
    %v761 = vadd.f32 0.0, %v760
    %v762 = vpop.f32.mrb[0].mxu0
    %763 = vmatprep.mubr.bf16.mxu0 0
    %764 = vmatmul.mubr.bf16.gmra.mrb[0].mxu0 %v416
    %v765 = vpop.f32.mrb[0].mxu0
    %v766 = vadd.f32 0.0, %v765
    %v767 = vpop.f32.mrb[0].mxu0
    %v768 = vpop.f32.mrb[0].mxu0
    %v769 = vadd.f32 0.0, %v768
    %v770 = vpop.f32.mrb[0].mxu0
    %771 = vmatprep.mubr.bf16.mxu0 0
    %772 = vmatmul.mubr.bf16.gmra.mrb[0].mxu0 %v417
    %v773 = vpop.f32.mrb[0].mxu0
    %v774 = vadd.f32 0.0, %v773
    %v775 = vpop.f32.mrb[0].mxu0
    %v776 = vpop.f32.mrb[0].mxu0
    %v777 = vadd.f32 0.0, %v776
    %v778 = vpop.f32.mrb[0].mxu0
    %779 = vmatprep.mubr.bf16.mxu0 0
    %780 = vmatmul.mubr.bf16.gmra.mrb[0].mxu0 %v418
    %v781 = vpop.f32.mrb[0].mxu0
    %v782 = vadd.f32 0.0, %v781
    %v783 = vpop.f32.mrb[0].mxu0
    %v784 = vpop.f32.mrb[0].mxu0
    %v785 = vadd.f32 0.0, %v784
    %v786 = vpop.f32.mrb[0].mxu0
    %787 = vdwg.mxu0
    %v788 = vadd.f32 %v115, %v534
    %v789 = vadd.f32 %v116, %v537
    %v790 = vadd.f32 %v117, %v542
    %v791 = vadd.f32 %v118, %v545
    %v792 = vadd.f32 %v119, %v550
    %v793 = vadd.f32 %v120, %v553
    %v794 = vadd.f32 %v121, %v558
    %v795 = vadd.f32 %v122, %v561
    %v796 = vadd.f32 %v123, %v566
    %v797 = vadd.f32 %v124, %v569
    %v798 = vadd.f32 %v125, %v574
    %v799 = vadd.f32 %v126, %v577
    %v800 = vadd.f32 %v127, %v582
    %v801 = vadd.f32 %v128, %v585
    %v802 = vadd.f32 %v129, %v590
    %v803 = vadd.f32 %v130, %v593
    %v804 = vadd.f32 %v131, %v598
    %v805 = vadd.f32 %v132, %v601
    %v806 = vadd.f32 %v133, %v606
    %v807 = vadd.f32 %v134, %v609
    %v808 = vadd.f32 %v135, %v614
    %v809 = vadd.f32 %v136, %v617
    %v810 = vadd.f32 %v137, %v622
    %v811 = vadd.f32 %v138, %v625
    %v812 = vadd.f32 %v139, %v630
    %v813 = vadd.f32 %v140, %v633
    %v814 = vadd.f32 %v141, %v638
    %v815 = vadd.f32 %v142, %v641
    %v816 = vadd.f32 %v143, %v646
    %v817 = vadd.f32 %v144, %v649
    %v818 = vadd.f32 %v145, %v654
    %v819 = vadd.f32 %v146, %v657
    %v820 = vadd.f32 %v147, %v662
    %v821 = vadd.f32 %v148, %v665
    %v822 = vadd.f32 %v149, %v670
    %v823 = vadd.f32 %v150, %v673
    %v824 = vadd.f32 %v151, %v678
    %v825 = vadd.f32 %v152, %v681
    %v826 = vadd.f32 %v153, %v686
    %v827 = vadd.f32 %v154, %v689
    %v828 = vadd.f32 %v155, %v694
    %v829 = vadd.f32 %v156, %v697
    %v830 = vadd.f32 %v157, %v702
    %v831 = vadd.f32 %v158, %v705
    %v832 = vadd.f32 %v159, %v710
    %v833 = vadd.f32 %v160, %v713
    %v834 = vadd.f32 %v161, %v718
    %v835 = vadd.f32 %v162, %v721
    %v836 = vadd.f32 %v163, %v726
    %v837 = vadd.f32 %v164, %v729
    %v838 = vadd.f32 %v165, %v734
    %v839 = vadd.f32 %v166, %v737
    %v840 = vadd.f32 %v167, %v742
    %v841 = vadd.f32 %v168, %v745
    %v842 = vadd.f32 %v169, %v750
    %v843 = vadd.f32 %v170, %v753
    %v844 = vadd.f32 %v171, %v758
    %v845 = vadd.f32 %v172, %v761
    %v846 = vadd.f32 %v173, %v766
    %v847 = vadd.f32 %v174, %v769
    %v848 = vadd.f32 %v175, %v774
    %v849 = vadd.f32 %v176, %v777
    %v850 = vadd.f32 %v177, %v782
    %v851 = vadd.f32 %v178, %v785
    %852 = vst [vmem:[#allocation2] sm:$0xff] %v788
    %853 = vst [vmem:[#allocation2 + $0x8] sm:$0xff] %v789
    %854 = vst [vmem:[#allocation2 + $0x10] sm:$0xff] %v790
    %855 = vst [vmem:[#allocation2 + $0x18] sm:$0xff] %v791
    %856 = vst [vmem:[#allocation2 + $0x20] sm:$0xff] %v792
    %857 = vst [vmem:[#allocation2 + $0x28] sm:$0xff] %v793
    %858 = vst [vmem:[#allocation2 + $0x30] sm:$0xff] %v794
    %859 = vst [vmem:[#allocation2 + $0x38] sm:$0xff] %v795
    %860 = vst [vmem:[#allocation2 + $0x40] sm:$0xff] %v796
    %861 = vst [vmem:[#allocation2 + $0x48] sm:$0xff] %v797
    %862 = vst [vmem:[#allocation2 + $0x50] sm:$0xff] %v798
    %863 = vst [vmem:[#allocation2 + $0x58] sm:$0xff] %v799
    %864 = vst [vmem:[#allocation2 + $0x60] sm:$0xff] %v800
    %865 = vst [vmem:[#allocation2 + $0x68] sm:$0xff] %v801
    %866 = vst [vmem:[#allocation2 + $0x70] sm:$0xff] %v802
    %867 = vst [vmem:[#allocation2 + $0x78] sm:$0xff] %v803
    %868 = vst [vmem:[#allocation2 + $0x80] sm:$0xff] %v804
    %869 = vst [vmem:[#allocation2 + $0x88] sm:$0xff] %v805
    %870 = vst [vmem:[#allocation2 + $0x90] sm:$0xff] %v806
    %871 = vst [vmem:[#allocation2 + $0x98] sm:$0xff] %v807
    %872 = vst [vmem:[#allocation2 + $0xa0] sm:$0xff] %v808
    %873 = vst [vmem:[#allocation2 + $0xa8] sm:$0xff] %v809
    %874 = vst [vmem:[#allocation2 + $0xb0] sm:$0xff] %v810
    %875 = vst [vmem:[#allocation2 + $0xb8] sm:$0xff] %v811
    %876 = vst [vmem:[#allocation2 + $0xc0] sm:$0xff] %v812
    %877 = vst [vmem:[#allocation2 + $0xc8] sm:$0xff] %v813
    %878 = vst [vmem:[#allocation2 + $0xd0] sm:$0xff] %v814
    %879 = vst [vmem:[#allocation2 + $0xd8] sm:$0xff] %v815
    %880 = vst [vmem:[#allocation2 + $0xe0] sm:$0xff] %v816
    %881 = vst [vmem:[#allocation2 + $0xe8] sm:$0xff] %v817
    %882 = vst [vmem:[#allocation2 + $0xf0] sm:$0xff] %v818
    %883 = vst [vmem:[#allocation2 + $0xf8] sm:$0xff] %v819
    %884 = vst [vmem:[#allocation2 + $0x100] sm:$0xff] %v820
    %885 = vst [vmem:[#allocation2 + $0x108] sm:$0xff] %v821
    %886 = vst [vmem:[#allocation2 + $0x110] sm:$0xff] %v822
    %887 = vst [vmem:[#allocation2 + $0x118] sm:$0xff] %v823
    %888 = vst [vmem:[#allocation2 + $0x120] sm:$0xff] %v824
    %889 = vst [vmem:[#allocation2 + $0x128] sm:$0xff] %v825
    %890 = vst [vmem:[#allocation2 + $0x130] sm:$0xff] %v826
    %891 = vst [vmem:[#allocation2 + $0x138] sm:$0xff] %v827
    %892 = vst [vmem:[#allocation2 + $0x140] sm:$0xff] %v828
    %893 = vst [vmem:[#allocation2 + $0x148] sm:$0xff] %v829
    %894 = vst [vmem:[#allocation2 + $0x150] sm:$0xff] %v830
    %895 = vst [vmem:[#allocation2 + $0x158] sm:$0xff] %v831
    %896 = vst [vmem:[#allocation2 + $0x160] sm:$0xff] %v832
    %897 = vst [vmem:[#allocation2 + $0x168] sm:$0xff] %v833
    %898 = vst [vmem:[#allocation2 + $0x170] sm:$0xff] %v834
    %899 = vst [vmem:[#allocation2 + $0x178] sm:$0xff] %v835
    %900 = vst [vmem:[#allocation2 + $0x180] sm:$0xff] %v836
    %901 = vst [vmem:[#allocation2 + $0x188] sm:$0xff] %v837
    %902 = vst [vmem:[#allocation2 + $0x190] sm:$0xff] %v838
    %903 = vst [vmem:[#allocation2 + $0x198] sm:$0xff] %v839
    %904 = vst [vmem:[#allocation2 + $0x1a0] sm:$0xff] %v840
    %905 = vst [vmem:[#allocation2 + $0x1a8] sm:$0xff] %v841
    %906 = vst [vmem:[#allocation2 + $0x1b0] sm:$0xff] %v842
    %907 = vst [vmem:[#allocation2 + $0x1b8] sm:$0xff] %v843
    %908 = vst [vmem:[#allocation2 + $0x1c0] sm:$0xff] %v844
    %909 = vst [vmem:[#allocation2 + $0x1c8] sm:$0xff] %v845
    %910 = vst [vmem:[#allocation2 + $0x1d0] sm:$0xff] %v846
    %911 = vst [vmem:[#allocation2 + $0x1d8] sm:$0xff] %v847
    %912 = vst [vmem:[#allocation2 + $0x1e0] sm:$0xff] %v848
    %913 = vst [vmem:[#allocation2 + $0x1e8] sm:$0xff] %v849
    %914 = vst [vmem:[#allocation2 + $0x1f0] sm:$0xff] %v850
    %915 = vst [vmem:[#allocation2 + $0x1f8] sm:$0xff] %v851
    // Predicated region
    $region30: #{tpu_custom_call.1} parent=1 // pred_check
      %p916 = pneg %p47
    $region31: #{tpu_custom_call.1} parent=1 // pred_check_branch
      %918 = sbr.rel (%p916) target = $region33
    $region32: #{tpu_custom_call.1} parent=1 // pred_region
      %v919 = vld [vmem:[#allocation2] sm:$0xff]
      %v920 = vld [vmem:[#allocation2 + $0x8] sm:$0xff]
      %v921 = vld [vmem:[#allocation2 + $0x10] sm:$0xff]
      %v922 = vld [vmem:[#allocation2 + $0x18] sm:$0xff]
      %v923 = vld [vmem:[#allocation2 + $0x20] sm:$0xff]
      %v924 = vld [vmem:[#allocation2 + $0x28] sm:$0xff]
      %v925 = vld [vmem:[#allocation2 + $0x30] sm:$0xff]
      %v926 = vld [vmem:[#allocation2 + $0x38] sm:$0xff]
      %v927 = vld [vmem:[#allocation2 + $0x40] sm:$0xff]
      %v928 = vld [vmem:[#allocation2 + $0x48] sm:$0xff]
      %v929 = vld [vmem:[#allocation2 + $0x50] sm:$0xff]
      %v930 = vld [vmem:[#allocation2 + $0x58] sm:$0xff]
      %v931 = vld [vmem:[#allocation2 + $0x60] sm:$0xff]
      %v932 = vld [vmem:[#allocation2 + $0x68] sm:$0xff]
      %v933 = vld [vmem:[#allocation2 + $0x70] sm:$0xff]
      %v934 = vld [vmem:[#allocation2 + $0x78] sm:$0xff]
      %v935 = vld [vmem:[#allocation2 + $0x80] sm:$0xff]
      %v936 = vld [vmem:[#allocation2 + $0x88] sm:$0xff]
      %v937 = vld [vmem:[#allocation2 + $0x90] sm:$0xff]
      %v938 = vld [vmem:[#allocation2 + $0x98] sm:$0xff]
      %v939 = vld [vmem:[#allocation2 + $0xa0] sm:$0xff]
      %v940 = vld [vmem:[#allocation2 + $0xa8] sm:$0xff]
      %v941 = vld [vmem:[#allocation2 + $0xb0] sm:$0xff]
      %v942 = vld [vmem:[#allocation2 + $0xb8] sm:$0xff]
      %v943 = vld [vmem:[#allocation2 + $0xc0] sm:$0xff]
      %v944 = vld [vmem:[#allocation2 + $0xc8] sm:$0xff]
      %v945 = vld [vmem:[#allocation2 + $0xd0] sm:$0xff]
      %v946 = vld [vmem:[#allocation2 + $0xd8] sm:$0xff]
      %v947 = vld [vmem:[#allocation2 + $0xe0] sm:$0xff]
      %v948 = vld [vmem:[#allocation2 + $0xe8] sm:$0xff]
      %v949 = vld [vmem:[#allocation2 + $0xf0] sm:$0xff]
      %v950 = vld [vmem:[#allocation2 + $0xf8] sm:$0xff]
      %v951 = vld [vmem:[#allocation2 + $0x100] sm:$0xff]
      %v952 = vld [vmem:[#allocation2 + $0x108] sm:$0xff]
      %v953 = vld [vmem:[#allocation2 + $0x110] sm:$0xff]
      %v954 = vld [vmem:[#allocation2 + $0x118] sm:$0xff]
      %v955 = vld [vmem:[#allocation2 + $0x120] sm:$0xff]
      %v956 = vld [vmem:[#allocation2 + $0x128] sm:$0xff]
      %v957 = vld [vmem:[#allocation2 + $0x130] sm:$0xff]
      %v958 = vld [vmem:[#allocation2 + $0x138] sm:$0xff]
      %v959 = vld [vmem:[#allocation2 + $0x140] sm:$0xff]
      %v960 = vld [vmem:[#allocation2 + $0x148] sm:$0xff]
      %v961 = vld [vmem:[#allocation2 + $0x150] sm:$0xff]
      %v962 = vld [vmem:[#allocation2 + $0x158] sm:$0xff]
      %v963 = vld [vmem:[#allocation2 + $0x160] sm:$0xff]
      %v964 = vld [vmem:[#allocation2 + $0x168] sm:$0xff]
      %v965 = vld [vmem:[#allocation2 + $0x170] sm:$0xff]
      %v966 = vld [vmem:[#allocation2 + $0x178] sm:$0xff]
      %v967 = vld [vmem:[#allocation2 + $0x180] sm:$0xff]
      %v968 = vld [vmem:[#allocation2 + $0x188] sm:$0xff]
      %v969 = vld [vmem:[#allocation2 + $0x190] sm:$0xff]
      %v970 = vld [vmem:[#allocation2 + $0x198] sm:$0xff]
      %v971 = vld [vmem:[#allocation2 + $0x1a0] sm:$0xff]
      %v972 = vld [vmem:[#allocation2 + $0x1a8] sm:$0xff]
      %v973 = vld [vmem:[#allocation2 + $0x1b0] sm:$0xff]
      %v974 = vld [vmem:[#allocation2 + $0x1b8] sm:$0xff]
      %v975 = vld [vmem:[#allocation2 + $0x1c0] sm:$0xff]
      %v976 = vld [vmem:[#allocation2 + $0x1c8] sm:$0xff]
      %v977 = vld [vmem:[#allocation2 + $0x1d0] sm:$0xff]
      %v978 = vld [vmem:[#allocation2 + $0x1d8] sm:$0xff]
      %v979 = vld [vmem:[#allocation2 + $0x1e0] sm:$0xff]
      %v980 = vld [vmem:[#allocation2 + $0x1e8] sm:$0xff]
      %v981 = vld [vmem:[#allocation2 + $0x1f0] sm:$0xff]
      %v982 = vld [vmem:[#allocation2 + $0x1f8] sm:$0xff]
      %v983 = vadd.f32 %v919, %v920
      %v984 = vadd.f32 %v983, %v921
      %v985 = vadd.f32 %v984, %v922
      %v986 = vadd.f32 %v985, %v923
      %v987 = vadd.f32 %v986, %v924
      %v988 = vadd.f32 %v987, %v925
      %v989 = vadd.f32 %v988, %v926
      %v990 = vadd.f32 %v989, %v927
      %v991 = vadd.f32 %v990, %v928
      %v992 = vadd.f32 %v991, %v929
      %v993 = vadd.f32 %v992, %v930
      %v994 = vadd.f32 %v993, %v931
      %v995 = vadd.f32 %v994, %v932
      %v996 = vadd.f32 %v995, %v933
      %v997 = vadd.f32 %v996, %v934
      %v998 = vadd.f32 %v997, %v935
      %v999 = vadd.f32 %v998, %v936
      %v1000 = vadd.f32 %v999, %v937
      %v1001 = vadd.f32 %v1000, %v938
      %v1002 = vadd.f32 %v1001, %v939
      %v1003 = vadd.f32 %v1002, %v940
      %v1004 = vadd.f32 %v1003, %v941
      %v1005 = vadd.f32 %v1004, %v942
      %v1006 = vadd.f32 %v1005, %v943
      %v1007 = vadd.f32 %v1006, %v944
      %v1008 = vadd.f32 %v1007, %v945
      %v1009 = vadd.f32 %v1008, %v946
      %v1010 = vadd.f32 %v1009, %v947
      %v1011 = vadd.f32 %v1010, %v948
      %v1012 = vadd.f32 %v1011, %v949
      %v1013 = vadd.f32 %v1012, %v950
      %v1014 = vadd.f32 %v1013, %v951
      %v1015 = vadd.f32 %v1014, %v952
      %v1016 = vadd.f32 %v1015, %v953
      %v1017 = vadd.f32 %v1016, %v954
      %v1018 = vadd.f32 %v1017, %v955
      %v1019 = vadd.f32 %v1018, %v956
      %v1020 = vadd.f32 %v1019, %v957
      %v1021 = vadd.f32 %v1020, %v958
      %v1022 = vadd.f32 %v1021, %v959
      %v1023 = vadd.f32 %v1022, %v960
      %v1024 = vadd.f32 %v1023, %v961
      %v1025 = vadd.f32 %v1024, %v962
      %v1026 = vadd.f32 %v1025, %v963
      %v1027 = vadd.f32 %v1026, %v964
      %v1028 = vadd.f32 %v1027, %v965
      %v1029 = vadd.f32 %v1028, %v966
      %v1030 = vadd.f32 %v1029, %v967
      %v1031 = vadd.f32 %v1030, %v968
      %v1032 = vadd.f32 %v1031, %v969
      %v1033 = vadd.f32 %v1032, %v970
      %v1034 = vadd.f32 %v1033, %v971
      %v1035 = vadd.f32 %v1034, %v972
      %v1036 = vadd.f32 %v1035, %v973
      %v1037 = vadd.f32 %v1036, %v974
      %v1038 = vadd.f32 %v1037, %v975
      %v1039 = vadd.f32 %v1038, %v976
      %v1040 = vadd.f32 %v1039, %v977
      %v1041 = vadd.f32 %v1040, %v978
      %v1042 = vadd.f32 %v1041, %v979
      %v1043 = vadd.f32 %v1042, %v980
      %v1044 = vadd.f32 %v1043, %v981
      %v1045 = vadd.f32 %v1044, %v982
      %v1046 = vrot.slane %v1045, 4
      %v1047 = vadd.f32 %v1045, %v1046
      %v1048 = vrot.slane %v1047, 2
      %v1049 = vadd.f32 %v1047, %v1048
      %v1050 = vrot.slane %v1049, 1
      %v1051 = vadd.f32 %v1049, %v1050
      %v1052 = vmul.f32 %v1051, 0.001953125
      %v1053 = vsub.f32 %v919, %v1052
      %v1054 = vsub.f32 %v920, %v1052
      %v1055 = vsub.f32 %v921, %v1052
      %v1056 = vsub.f32 %v922, %v1052
      %v1057 = vsub.f32 %v923, %v1052
      %v1058 = vsub.f32 %v924, %v1052
      %v1059 = vsub.f32 %v925, %v1052
      %v1060 = vsub.f32 %v926, %v1052
      %v1061 = vsub.f32 %v927, %v1052
      %v1062 = vsub.f32 %v928, %v1052
      %v1063 = vsub.f32 %v929, %v1052
      %v1064 = vsub.f32 %v930, %v1052
      %v1065 = vsub.f32 %v931, %v1052
      %v1066 = vsub.f32 %v932, %v1052
      %v1067 = vsub.f32 %v933, %v1052
      %v1068 = vsub.f32 %v934, %v1052
      %v1069 = vsub.f32 %v935, %v1052
      %v1070 = vsub.f32 %v936, %v1052
      %v1071 = vsub.f32 %v937, %v1052
      %v1072 = vsub.f32 %v938, %v1052
      %v1073 = vsub.f32 %v939, %v1052
      %v1074 = vsub.f32 %v940, %v1052
      %v1075 = vsub.f32 %v941, %v1052
      %v1076 = vsub.f32 %v942, %v1052
      %v1077 = vsub.f32 %v943, %v1052
      %v1078 = vsub.f32 %v944, %v1052
      %v1079 = vsub.f32 %v945, %v1052
      %v1080 = vsub.f32 %v946, %v1052
      %v1081 = vsub.f32 %v947, %v1052
      %v1082 = vsub.f32 %v948, %v1052
      %v1083 = vsub.f32 %v949, %v1052
      %v1084 = vsub.f32 %v950, %v1052
      %v1085 = vsub.f32 %v951, %v1052
      %v1086 = vsub.f32 %v952, %v1052
      %v1087 = vsub.f32 %v953, %v1052
      %v1088 = vsub.f32 %v954, %v1052
      %v1089 = vsub.f32 %v955, %v1052
      %v1090 = vsub.f32 %v956, %v1052
      %v1091 = vsub.f32 %v957, %v1052
      %v1092 = vsub.f32 %v958, %v1052
      %v1093 = vsub.f32 %v959, %v1052
      %v1094 = vsub.f32 %v960, %v1052
      %v1095 = vsub.f32 %v961, %v1052
      %v1096 = vsub.f32 %v962, %v1052
      %v1097 = vsub.f32 %v963, %v1052
      %v1098 = vsub.f32 %v964, %v1052
      %v1099 = vsub.f32 %v965, %v1052
      %v1100 = vsub.f32 %v966, %v1052
      %v1101 = vsub.f32 %v967, %v1052
      %v1102 = vsub.f32 %v968, %v1052
      %v1103 = vsub.f32 %v969, %v1052
      %v1104 = vsub.f32 %v970, %v1052
      %v1105 = vsub.f32 %v971, %v1052
      %v1106 = vsub.f32 %v972, %v1052
      %v1107 = vsub.f32 %v973, %v1052
      %v1108 = vsub.f32 %v974, %v1052
      %v1109 = vsub.f32 %v975, %v1052
      %v1110 = vsub.f32 %v976, %v1052
      %v1111 = vsub.f32 %v977, %v1052
      %v1112 = vsub.f32 %v978, %v1052
      %v1113 = vsub.f32 %v979, %v1052
      %v1114 = vsub.f32 %v980, %v1052
      %v1115 = vsub.f32 %v981, %v1052
      %v1116 = vsub.f32 %v982, %v1052
      %v1117 = vmul.f32 %v1053, %v1053
      %v1118 = vmul.f32 %v1054, %v1054
      %v1119 = vmul.f32 %v1055, %v1055
      %v1120 = vmul.f32 %v1056, %v1056
      %v1121 = vmul.f32 %v1057, %v1057
      %v1122 = vmul.f32 %v1058, %v1058
      %v1123 = vmul.f32 %v1059, %v1059
      %v1124 = vmul.f32 %v1060, %v1060
      %v1125 = vmul.f32 %v1061, %v1061
      %v1126 = vmul.f32 %v1062, %v1062
      %v1127 = vmul.f32 %v1063, %v1063
      %v1128 = vmul.f32 %v1064, %v1064
      %v1129 = vmul.f32 %v1065, %v1065
      %v1130 = vmul.f32 %v1066, %v1066
      %v1131 = vmul.f32 %v1067, %v1067
      %v1132 = vmul.f32 %v1068, %v1068
      %v1133 = vmul.f32 %v1069, %v1069
      %v1134 = vmul.f32 %v1070, %v1070
      %v1135 = vmul.f32 %v1071, %v1071
      %v1136 = vmul.f32 %v1072, %v1072
      %v1137 = vmul.f32 %v1073, %v1073
      %v1138 = vmul.f32 %v1074, %v1074
      %v1139 = vmul.f32 %v1075, %v1075
      %v1140 = vmul.f32 %v1076, %v1076
      %v1141 = vmul.f32 %v1077, %v1077
      %v1142 = vmul.f32 %v1078, %v1078
      %v1143 = vmul.f32 %v1079, %v1079
      %v1144 = vmul.f32 %v1080, %v1080
      %v1145 = vmul.f32 %v1081, %v1081
      %v1146 = vmul.f32 %v1082, %v1082
      %v1147 = vmul.f32 %v1083, %v1083
      %v1148 = vmul.f32 %v1084, %v1084
      %v1149 = vmul.f32 %v1085, %v1085
      %v1150 = vmul.f32 %v1086, %v1086
      %v1151 = vmul.f32 %v1087, %v1087
      %v1152 = vmul.f32 %v1088, %v1088
      %v1153 = vmul.f32 %v1089, %v1089
      %v1154 = vmul.f32 %v1090, %v1090
      %v1155 = vmul.f32 %v1091, %v1091
      %v1156 = vmul.f32 %v1092, %v1092
      %v1157 = vmul.f32 %v1093, %v1093
      %v1158 = vmul.f32 %v1094, %v1094
      %v1159 = vmul.f32 %v1095, %v1095
      %v1160 = vmul.f32 %v1096, %v1096
      %v1161 = vmul.f32 %v1097, %v1097
      %v1162 = vmul.f32 %v1098, %v1098
      %v1163 = vmul.f32 %v1099, %v1099
      %v1164 = vmul.f32 %v1100, %v1100
      %v1165 = vmul.f32 %v1101, %v1101
      %v1166 = vmul.f32 %v1102, %v1102
      %v1167 = vmul.f32 %v1103, %v1103
      %v1168 = vmul.f32 %v1104, %v1104
      %v1169 = vmul.f32 %v1105, %v1105
      %v1170 = vmul.f32 %v1106, %v1106
      %v1171 = vmul.f32 %v1107, %v1107
      %v1172 = vmul.f32 %v1108, %v1108
      %v1173 = vmul.f32 %v1109, %v1109
      %v1174 = vmul.f32 %v1110, %v1110
      %v1175 = vmul.f32 %v1111, %v1111
      %v1176 = vmul.f32 %v1112, %v1112
      %v1177 = vmul.f32 %v1113, %v1113
      %v1178 = vmul.f32 %v1114, %v1114
      %v1179 = vmul.f32 %v1115, %v1115
      %v1180 = vmul.f32 %v1116, %v1116
      %v1181 = vadd.f32 %v1117, %v1118
      %v1182 = vadd.f32 %v1181, %v1119
      %v1183 = vadd.f32 %v1182, %v1120
      %v1184 = vadd.f32 %v1183, %v1121
      %v1185 = vadd.f32 %v1184, %v1122
      %v1186 = vadd.f32 %v1185, %v1123
      %v1187 = vadd.f32 %v1186, %v1124
      %v1188 = vadd.f32 %v1187, %v1125
      %v1189 = vadd.f32 %v1188, %v1126
      %v1190 = vadd.f32 %v1189, %v1127
      %v1191 = vadd.f32 %v1190, %v1128
      %v1192 = vadd.f32 %v1191, %v1129
      %v1193 = vadd.f32 %v1192, %v1130
      %v1194 = vadd.f32 %v1193, %v1131
      %v1195 = vadd.f32 %v1194, %v1132
      %v1196 = vadd.f32 %v1195, %v1133
      %v1197 = vadd.f32 %v1196, %v1134
      %v1198 = vadd.f32 %v1197, %v1135
      %v1199 = vadd.f32 %v1198, %v1136
      %v1200 = vadd.f32 %v1199, %v1137
      %v1201 = vadd.f32 %v1200, %v1138
      %v1202 = vadd.f32 %v1201, %v1139
      %v1203 = vadd.f32 %v1202, %v1140
      %v1204 = vadd.f32 %v1203, %v1141
      %v1205 = vadd.f32 %v1204, %v1142
      %v1206 = vadd.f32 %v1205, %v1143
      %v1207 = vadd.f32 %v1206, %v1144
      %v1208 = vadd.f32 %v1207, %v1145
      %v1209 = vadd.f32 %v1208, %v1146
      %v1210 = vadd.f32 %v1209, %v1147
      %v1211 = vadd.f32 %v1210, %v1148
      %v1212 = vadd.f32 %v1211, %v1149
      %v1213 = vadd.f32 %v1212, %v1150
      %v1214 = vadd.f32 %v1213, %v1151
      %v1215 = vadd.f32 %v1214, %v1152
      %v1216 = vadd.f32 %v1215, %v1153
      %v1217 = vadd.f32 %v1216, %v1154
      %v1218 = vadd.f32 %v1217, %v1155
      %v1219 = vadd.f32 %v1218, %v1156
      %v1220 = vadd.f32 %v1219, %v1157
      %v1221 = vadd.f32 %v1220, %v1158
      %v1222 = vadd.f32 %v1221, %v1159
      %v1223 = vadd.f32 %v1222, %v1160
      %v1224 = vadd.f32 %v1223, %v1161
      %v1225 = vadd.f32 %v1224, %v1162
      %v1226 = vadd.f32 %v1225, %v1163
      %v1227 = vadd.f32 %v1226, %v1164
      %v1228 = vadd.f32 %v1227, %v1165
      %v1229 = vadd.f32 %v1228, %v1166
      %v1230 = vadd.f32 %v1229, %v1167
      %v1231 = vadd.f32 %v1230, %v1168
      %v1232 = vadd.f32 %v1231, %v1169
      %v1233 = vadd.f32 %v1232, %v1170
      %v1234 = vadd.f32 %v1233, %v1171
      %v1235 = vadd.f32 %v1234, %v1172
      %v1236 = vadd.f32 %v1235, %v1173
      %v1237 = vadd.f32 %v1236, %v1174
      %v1238 = vadd.f32 %v1237, %v1175
      %v1239 = vadd.f32 %v1238, %v1176
      %v1240 = vadd.f32 %v1239, %v1177
      %v1241 = vadd.f32 %v1240, %v1178
      %v1242 = vadd.f32 %v1241, %v1179
      %v1243 = vadd.f32 %v1242, %v1180
      %v1244 = vrot.slane %v1243, 4
      %v1245 = vadd.f32 %v1243, %v1244
      %v1246 = vrot.slane %v1245, 2
      %v1247 = vadd.f32 %v1245, %v1246
      %v1248 = vrot.slane %v1247, 1
      %v1249 = vadd.f32 %v1247, %v1248
      %v1250 = vmul.f32 %v1249, 0.001953125
      %v1251 = vld [vmem:[%s2] sm:$0x1]
      %v1252 = vadd.f32 %v1250, 1e-05
      %v1253 = vrsqrt.pop %v1252
      %v1254 = vmul.f32 %v1251, %v1253
      %v1256 = vlaneseq
      %v1257 = vshrl.u32 %v1256, 7
      %v1258 = vsub.s32 0, %v1257
      %v1259 = vrot.slane %v1254, %v1258
      %v1261 = vmul.f32 %v1053, %v1259
      %v1262 = vmul.f32 %v1054, %v1259
      %v1263 = vmul.f32 %v1055, %v1259
      %v1264 = vmul.f32 %v1056, %v1259
      %v1265 = vmul.f32 %v1057, %v1259
      %v1266 = vmul.f32 %v1058, %v1259
      %v1267 = vmul.f32 %v1059, %v1259
      %v1268 = vmul.f32 %v1060, %v1259
      %v1269 = vmul.f32 %v1061, %v1259
      %v1270 = vmul.f32 %v1062, %v1259
      %v1271 = vmul.f32 %v1063, %v1259
      %v1272 = vmul.f32 %v1064, %v1259
      %v1273 = vmul.f32 %v1065, %v1259
      %v1274 = vmul.f32 %v1066, %v1259
      %v1275 = vmul.f32 %v1067, %v1259
      %v1276 = vmul.f32 %v1068, %v1259
      %v1277 = vmul.f32 %v1069, %v1259
      %v1278 = vmul.f32 %v1070, %v1259
      %v1279 = vmul.f32 %v1071, %v1259
      %v1280 = vmul.f32 %v1072, %v1259
      %v1281 = vmul.f32 %v1073, %v1259
      %v1282 = vmul.f32 %v1074, %v1259
      %v1283 = vmul.f32 %v1075, %v1259
      %v1284 = vmul.f32 %v1076, %v1259
      %v1285 = vmul.f32 %v1077, %v1259
      %v1286 = vmul.f32 %v1078, %v1259
      %v1287 = vmul.f32 %v1079, %v1259
      %v1288 = vmul.f32 %v1080, %v1259
      %v1289 = vmul.f32 %v1081, %v1259
      %v1290 = vmul.f32 %v1082, %v1259
      %v1291 = vmul.f32 %v1083, %v1259
      %v1292 = vmul.f32 %v1084, %v1259
      %v1293 = vmul.f32 %v1085, %v1259
      %v1294 = vmul.f32 %v1086, %v1259
      %v1295 = vmul.f32 %v1087, %v1259
      %v1296 = vmul.f32 %v1088, %v1259
      %v1297 = vmul.f32 %v1089, %v1259
      %v1298 = vmul.f32 %v1090, %v1259
      %v1299 = vmul.f32 %v1091, %v1259
      %v1300 = vmul.f32 %v1092, %v1259
      %v1301 = vmul.f32 %v1093, %v1259
      %v1302 = vmul.f32 %v1094, %v1259
      %v1303 = vmul.f32 %v1095, %v1259
      %v1304 = vmul.f32 %v1096, %v1259
      %v1305 = vmul.f32 %v1097, %v1259
      %v1306 = vmul.f32 %v1098, %v1259
      %v1307 = vmul.f32 %v1099, %v1259
      %v1308 = vmul.f32 %v1100, %v1259
      %v1309 = vmul.f32 %v1101, %v1259
      %v1310 = vmul.f32 %v1102, %v1259
      %v1311 = vmul.f32 %v1103, %v1259
      %v1312 = vmul.f32 %v1104, %v1259
      %v1313 = vmul.f32 %v1105, %v1259
      %v1314 = vmul.f32 %v1106, %v1259
      %v1315 = vmul.f32 %v1107, %v1259
      %v1316 = vmul.f32 %v1108, %v1259
      %v1317 = vmul.f32 %v1109, %v1259
      %v1318 = vmul.f32 %v1110, %v1259
      %v1319 = vmul.f32 %v1111, %v1259
      %v1320 = vmul.f32 %v1112, %v1259
      %v1321 = vmul.f32 %v1113, %v1259
      %v1322 = vmul.f32 %v1114, %v1259
      %v1323 = vmul.f32 %v1115, %v1259
      %v1324 = vmul.f32 %v1116, %v1259
      %v1325 = vld [vmem:[%s3] sm:$0x1]
      %v1327 = vlaneseq
      %v1328 = vshrl.u32 %v1327, 7
      %v1329 = vsub.s32 0, %v1328
      %v1330 = vrot.slane %v1325, %v1329
      %v1332 = vadd.f32 %v1261, %v1330
      %v1333 = vadd.f32 %v1262, %v1330
      %v1334 = vadd.f32 %v1263, %v1330
      %v1335 = vadd.f32 %v1264, %v1330
      %v1336 = vadd.f32 %v1265, %v1330
      %v1337 = vadd.f32 %v1266, %v1330
      %v1338 = vadd.f32 %v1267, %v1330
      %v1339 = vadd.f32 %v1268, %v1330
      %v1340 = vadd.f32 %v1269, %v1330
      %v1341 = vadd.f32 %v1270, %v1330
      %v1342 = vadd.f32 %v1271, %v1330
      %v1343 = vadd.f32 %v1272, %v1330
      %v1344 = vadd.f32 %v1273, %v1330
      %v1345 = vadd.f32 %v1274, %v1330
      %v1346 = vadd.f32 %v1275, %v1330
      %v1347 = vadd.f32 %v1276, %v1330
      %v1348 = vadd.f32 %v1277, %v1330
      %v1349 = vadd.f32 %v1278, %v1330
      %v1350 = vadd.f32 %v1279, %v1330
      %v1351 = vadd.f32 %v1280, %v1330
      %v1352 = vadd.f32 %v1281, %v1330
      %v1353 = vadd.f32 %v1282, %v1330
      %v1354 = vadd.f32 %v1283, %v1330
      %v1355 = vadd.f32 %v1284, %v1330
      %v1356 = vadd.f32 %v1285, %v1330
      %v1357 = vadd.f32 %v1286, %v1330
      %v1358 = vadd.f32 %v1287, %v1330
      %v1359 = vadd.f32 %v1288, %v1330
      %v1360 = vadd.f32 %v1289, %v1330
      %v1361 = vadd.f32 %v1290, %v1330
      %v1362 = vadd.f32 %v1291, %v1330
      %v1363 = vadd.f32 %v1292, %v1330
      %v1364 = vadd.f32 %v1293, %v1330
      %v1365 = vadd.f32 %v1294, %v1330
      %v1366 = vadd.f32 %v1295, %v1330
      %v1367 = vadd.f32 %v1296, %v1330
      %v1368 = vadd.f32 %v1297, %v1330
      %v1369 = vadd.f32 %v1298, %v1330
      %v1370 = vadd.f32 %v1299, %v1330
      %v1371 = vadd.f32 %v1300, %v1330
      %v1372 = vadd.f32 %v1301, %v1330
      %v1373 = vadd.f32 %v1302, %v1330
      %v1374 = vadd.f32 %v1303, %v1330
      %v1375 = vadd.f32 %v1304, %v1330
      %v1376 = vadd.f32 %v1305, %v1330
      %v1377 = vadd.f32 %v1306, %v1330
      %v1378 = vadd.f32 %v1307, %v1330
      %v1379 = vadd.f32 %v1308, %v1330
      %v1380 = vadd.f32 %v1309, %v1330
      %v1381 = vadd.f32 %v1310, %v1330
      %v1382 = vadd.f32 %v1311, %v1330
      %v1383 = vadd.f32 %v1312, %v1330
      %v1384 = vadd.f32 %v1313, %v1330
      %v1385 = vadd.f32 %v1314, %v1330
      %v1386 = vadd.f32 %v1315, %v1330
      %v1387 = vadd.f32 %v1316, %v1330
      %v1388 = vadd.f32 %v1317, %v1330
      %v1389 = vadd.f32 %v1318, %v1330
      %v1390 = vadd.f32 %v1319, %v1330
      %v1391 = vadd.f32 %v1320, %v1330
      %v1392 = vadd.f32 %v1321, %v1330
      %v1393 = vadd.f32 %v1322, %v1330
      %v1394 = vadd.f32 %v1323, %v1330
      %v1395 = vadd.f32 %v1324, %v1330
      %v1396 = vmax.f32 %v1332, 0.0
      %v1397 = vmax.f32 %v1333, 0.0
      %v1398 = vmax.f32 %v1334, 0.0
      %v1399 = vmax.f32 %v1335, 0.0
      %v1400 = vmax.f32 %v1336, 0.0
      %v1401 = vmax.f32 %v1337, 0.0
      %v1402 = vmax.f32 %v1338, 0.0
      %v1403 = vmax.f32 %v1339, 0.0
      %v1404 = vmax.f32 %v1340, 0.0
      %v1405 = vmax.f32 %v1341, 0.0
      %v1406 = vmax.f32 %v1342, 0.0
      %v1407 = vmax.f32 %v1343, 0.0
      %v1408 = vmax.f32 %v1344, 0.0
      %v1409 = vmax.f32 %v1345, 0.0
      %v1410 = vmax.f32 %v1346, 0.0
      %v1411 = vmax.f32 %v1347, 0.0
      %v1412 = vmax.f32 %v1348, 0.0
      %v1413 = vmax.f32 %v1349, 0.0
      %v1414 = vmax.f32 %v1350, 0.0
      %v1415 = vmax.f32 %v1351, 0.0
      %v1416 = vmax.f32 %v1352, 0.0
      %v1417 = vmax.f32 %v1353, 0.0
      %v1418 = vmax.f32 %v1354, 0.0
      %v1419 = vmax.f32 %v1355, 0.0
      %v1420 = vmax.f32 %v1356, 0.0
      %v1421 = vmax.f32 %v1357, 0.0
      %v1422 = vmax.f32 %v1358, 0.0
      %v1423 = vmax.f32 %v1359, 0.0
      %v1424 = vmax.f32 %v1360, 0.0
      %v1425 = vmax.f32 %v1361, 0.0
      %v1426 = vmax.f32 %v1362, 0.0
      %v1427 = vmax.f32 %v1363, 0.0
      %v1428 = vmax.f32 %v1364, 0.0
      %v1429 = vmax.f32 %v1365, 0.0
      %v1430 = vmax.f32 %v1366, 0.0
      %v1431 = vmax.f32 %v1367, 0.0
      %v1432 = vmax.f32 %v1368, 0.0
      %v1433 = vmax.f32 %v1369, 0.0
      %v1434 = vmax.f32 %v1370, 0.0
      %v1435 = vmax.f32 %v1371, 0.0
      %v1436 = vmax.f32 %v1372, 0.0
      %v1437 = vmax.f32 %v1373, 0.0
      %v1438 = vmax.f32 %v1374, 0.0
      %v1439 = vmax.f32 %v1375, 0.0
      %v1440 = vmax.f32 %v1376, 0.0
      %v1441 = vmax.f32 %v1377, 0.0
      %v1442 = vmax.f32 %v1378, 0.0
      %v1443 = vmax.f32 %v1379, 0.0
      %v1444 = vmax.f32 %v1380, 0.0
      %v1445 = vmax.f32 %v1381, 0.0
      %v1446 = vmax.f32 %v1382, 0.0
      %v1447 = vmax.f32 %v1383, 0.0
      %v1448 = vmax.f32 %v1384, 0.0
      %v1449 = vmax.f32 %v1385, 0.0
      %v1450 = vmax.f32 %v1386, 0.0
      %v1451 = vmax.f32 %v1387, 0.0
      %v1452 = vmax.f32 %v1388, 0.0
      %v1453 = vmax.f32 %v1389, 0.0
      %v1454 = vmax.f32 %v1390, 0.0
      %v1455 = vmax.f32 %v1391, 0.0
      %v1456 = vmax.f32 %v1392, 0.0
      %v1457 = vmax.f32 %v1393, 0.0
      %v1458 = vmax.f32 %v1394, 0.0
      %v1459 = vmax.f32 %v1395, 0.0
      %1460 = vst [vmem:[#allocation8] sm:$0xff] %v1396
      %1461 = vst [vmem:[#allocation8 + $0x8] sm:$0xff] %v1397
      %1462 = vst [vmem:[#allocation8 + $0x10] sm:$0xff] %v1398
      %1463 = vst [vmem:[#allocation8 + $0x18] sm:$0xff] %v1399
      %1464 = vst [vmem:[#allocation8 + $0x20] sm:$0xff] %v1400
      %1465 = vst [vmem:[#allocation8 + $0x28] sm:$0xff] %v1401
      %1466 = vst [vmem:[#allocation8 + $0x30] sm:$0xff] %v1402
      %1467 = vst [vmem:[#allocation8 + $0x38] sm:$0xff] %v1403
      %1468 = vst [vmem:[#allocation8 + $0x40] sm:$0xff] %v1404
      %1469 = vst [vmem:[#allocation8 + $0x48] sm:$0xff] %v1405
      %1470 = vst [vmem:[#allocation8 + $0x50] sm:$0xff] %v1406
      %1471 = vst [vmem:[#allocation8 + $0x58] sm:$0xff] %v1407
      %1472 = vst [vmem:[#allocation8 + $0x60] sm:$0xff] %v1408
      %1473 = vst [vmem:[#allocation8 + $0x68] sm:$0xff] %v1409
      %1474 = vst [vmem:[#allocation8 + $0x70] sm:$0xff] %v1410
      %1475 = vst [vmem:[#allocation8 + $0x78] sm:$0xff] %v1411
      %1476 = vst [vmem:[#allocation8 + $0x80] sm:$0xff] %v1412
      %1477 = vst [vmem:[#allocation8 + $0x88] sm:$0xff] %v1413
      %1478 = vst [vmem:[#allocation8 + $0x90] sm:$0xff] %v1414
      %1479 = vst [vmem:[#allocation8 + $0x98] sm:$0xff] %v1415
      %1480 = vst [vmem:[#allocation8 + $0xa0] sm:$0xff] %v1416
      %1481 = vst [vmem:[#allocation8 + $0xa8] sm:$0xff] %v1417
      %1482 = vst [vmem:[#allocation8 + $0xb0] sm:$0xff] %v1418
      %1483 = vst [vmem:[#allocation8 + $0xb8] sm:$0xff] %v1419
      %1484 = vst [vmem:[#allocation8 + $0xc0] sm:$0xff] %v1420
      %1485 = vst [vmem:[#allocation8 + $0xc8] sm:$0xff] %v1421
      %1486 = vst [vmem:[#allocation8 + $0xd0] sm:$0xff] %v1422
      %1487 = vst [vmem:[#allocation8 + $0xd8] sm:$0xff] %v1423
      %1488 = vst [vmem:[#allocation8 + $0xe0] sm:$0xff] %v1424
      %1489 = vst [vmem:[#allocation8 + $0xe8] sm:$0xff] %v1425
      %1490 = vst [vmem:[#allocation8 + $0xf0] sm:$0xff] %v1426
      %1491 = vst [vmem:[#allocation8 + $0xf8] sm:$0xff] %v1427
      %1492 = vst [vmem:[#allocation8 + $0x100] sm:$0xff] %v1428
      %1493 = vst [vmem:[#allocation8 + $0x108] sm:$0xff] %v1429
      %1494 = vst [vmem:[#allocation8 + $0x110] sm:$0xff] %v1430
      %1495 = vst [vmem:[#allocation8 + $0x118] sm:$0xff] %v1431
      %1496 = vst [vmem:[#allocation8 + $0x120] sm:$0xff] %v1432
      %1497 = vst [vmem:[#allocation8 + $0x128] sm:$0xff] %v1433
      %1498 = vst [vmem:[#allocation8 + $0x130] sm:$0xff] %v1434
      %1499 = vst [vmem:[#allocation8 + $0x138] sm:$0xff] %v1435
      %1500 = vst [vmem:[#allocation8 + $0x140] sm:$0xff] %v1436
      %1501 = vst [vmem:[#allocation8 + $0x148] sm:$0xff] %v1437
      %1502 = vst [vmem:[#allocation8 + $0x150] sm:$0xff] %v1438
      %1503 = vst [vmem:[#allocation8 + $0x158] sm:$0xff] %v1439
      %1504 = vst [vmem:[#allocation8 + $0x160] sm:$0xff] %v1440
      %1505 = vst [vmem:[#allocation8 + $0x168] sm:$0xff] %v1441
      %1506 = vst [vmem:[#allocation8 + $0x170] sm:$0xff] %v1442
      %1507 = vst [vmem:[#allocation8 + $0x178] sm:$0xff] %v1443
      %1508 = vst [vmem:[#allocation8 + $0x180] sm:$0xff] %v1444
      %1509 = vst [vmem:[#allocation8 + $0x188] sm:$0xff] %v1445
      %1510 = vst [vmem:[#allocation8 + $0x190] sm:$0xff] %v1446
      %1511 = vst [vmem:[#allocation8 + $0x198] sm:$0xff] %v1447
      %1512 = vst [vmem:[#allocation8 + $0x1a0] sm:$0xff] %v1448
      %1513 = vst [vmem:[#allocation8 + $0x1a8] sm:$0xff] %v1449
      %1514 = vst [vmem:[#allocation8 + $0x1b0] sm:$0xff] %v1450
      %1515 = vst [vmem:[#allocation8 + $0x1b8] sm:$0xff] %v1451
      %1516 = vst [vmem:[#allocation8 + $0x1c0] sm:$0xff] %v1452
      %1517 = vst [vmem:[#allocation8 + $0x1c8] sm:$0xff] %v1453
      %1518 = vst [vmem:[#allocation8 + $0x1d0] sm:$0xff] %v1454
      %1519 = vst [vmem:[#allocation8 + $0x1d8] sm:$0xff] %v1455
      %1520 = vst [vmem:[#allocation8 + $0x1e0] sm:$0xff] %v1456
      %1521 = vst [vmem:[#allocation8 + $0x1e8] sm:$0xff] %v1457
      %1522 = vst [vmem:[#allocation8 + $0x1f0] sm:$0xff] %v1458
      %1523 = vst [vmem:[#allocation8 + $0x1f8] sm:$0xff] %v1459
    $region33: #{tpu_custom_call.1} parent=1 // pred_fallthru
      _
    // Predicated region
    $region34: #{tpu_custom_call.1} parent=1 // pred_check
      _
    $region35: #{tpu_custom_call.1} parent=1 // pred_check_branch
      %1525 = sbr.rel (0) target = $region37
    $region36: #{tpu_custom_call.1} parent=1 // pred_region
      %s1527 = ssub.s32 8192, 8192
      %1528 = vsyncadd [#allocation5], %s1527
      %s1529 = sshll.u32 [#allocation8], 4
      %s1530 = int_to_ptr.vmem [resolvable:$true] %s1529
      %1535 = dma.vmem_to_hbm [thread:$0]  %s1530, 8192, %s4, [#allocation5], 128, 128, 8
    $region37: #{tpu_custom_call.1} parent=1 // pred_fallthru
      _
    // Predicated region
    $region38: #{tpu_custom_call.1} parent=1 // pred_check
      _
    $region39: #{tpu_custom_call.1} parent=1 // pred_check_branch
      %1537 = sbr.rel (0) target = $region41
    $region40: #{tpu_custom_call.1} parent=1 // pred_region
      %1538 = dma.done [#allocation5], 8192
    $region41: #{tpu_custom_call.1} parent=1 // pred_fallthru
      _
    %1539 = vsyncpa [#allocation4], 1
    %1540 = vsyncpa [#allocation7], 1
    %1541 = vsyncpa [#allocation5], 1

</llo_original>
